<compile_context>
chip_gen: v5e
topology: v5e:2x2
jax: 0.10.0
libtpu: 0.0.40
codegen_flags: <defaults>
</compile_context>

<pallas_src>
import jax
import jax.numpy as jnp
from jax import lax
from jax.experimental import pallas as pl
from jax.experimental.pallas import tpu as pltpu

# ---------------------------------------------------------------------------
# Constants (module hyper-params + synthetic graph sizes)
# ---------------------------------------------------------------------------
EPS_GEN = 1e-7            # GENConv message epsilon
EPS_BN = 1e-5             # BatchNorm1d epsilon

HIDDEN = 32               # hidden_channels
EXPANSION = 4             # GENConv expansion
HX = HIDDEN * EXPANSION   # 128 == one vreg lane width
OUT = 16                  # out_channels
LANE = 128
NUM_LAYERS = 2

F_RES, F_ATOM = 24, 16    # lazy (-1, -1) input dims, resolved here
N_RES, N_ATOM = 16, 24    # node counts (synthetic)
E_PAD = 64                # per-relation edge-count pad (exact no-op padding)

EDGE_TYPES = {            # key -> (src node type, dst node type)
    "rr": ("residue", "residue"),
    "ra": ("residue", "atom"),
    "ar": ("atom", "residue"),
    "aa": ("atom", "atom"),
}
EDGE_FEAT = {"rr": 5 * 5 * 16, "ra": 5 * 16, "ar": 5 * 16, "aa": 16}
REL_ORDER = ("rr", "ra", "ar", "aa")

# 128-aligned per-relation column blocks of the packed edge-attribute buffer
EDGE_PAD = {"rr": 512, "ra": 128, "ar": 128, "aa": 128}
EDGE_OFF = {}
_off = 0
for _rel in REL_ORDER:
    EDGE_OFF[_rel] = _off
    _off += EDGE_PAD[_rel]
EW = _off                                      # 896

# Row layout of the single packed (WMAT_ROWS, 128) matrix-weight buffer
ROW_WEDGE = 0                                  # (896,128) block-diagonal lin_edge
ROW_PROJ_RES = ROW_WEDGE + EW                  # (24,128)  [src_rr|src_ra|dst_rr|dst_ar]
ROW_PROJ_ATM = ROW_PROJ_RES + F_RES            # (16,128)  [src_ar|src_aa|dst_ra|dst_aa]
ROW_W1 = ROW_PROJ_ATM + F_ATOM                 # 4 x (32,128) GENConv MLP first linears
ROW_W2 = ROW_W1 + 4 * HIDDEN                   # 4 x (128,128) second linears (col-padded)
ROW_LINW = ROW_W2 + 4 * HX                     # (128,128) head Linear (row/col padded)
WMAT_ROWS = ROW_LINW + HX                      # 1704 (multiple of 8)

# Row layout of the packed (16,128) vector buffer
VEC_BN_G = 8       # shared BatchNorm1d gamma (cols 0:HIDDEN valid)
VEC_BN_B = 9       # shared BatchNorm1d beta
VEC_LIN_B = 10     # head bias (cols 0:OUT valid)
VEC_ROWS = 16      # rows 2r / 2r+1 : gamma1 / beta1 of relation REL_ORDER[r]


# ---------------------------------------------------------------------------
# Fused kernel: entire forward (last HeteroConv layer + shared BN + head).
# Edge gather / scatter-add are dense one-hot matmuls so they run on the MXU
# (exact for these small synthetic graphs).
# TODO(synk): dense one-hot gather/scatter is a toy-scale stand-in; at real
#   graph sizes replace with scalar-prefetched edge indices
#   (PrefetchScalarGridSpec + pl.ds row gather / tiled scatter-accumulate) --
#   mandatory on v7x (64 MiB VMEM) before scaling E or N.
# TODO(synk): on v7x add a 2-way 'parallel' grid axis (residue-destination vs
#   atom-destination halves) so both TensorCores are used; this single-step
#   grid runs on one TC.
# ---------------------------------------------------------------------------
def _hetero_kernel(x_res_ref, x_atm_ref, eattr_ref, gres_ref, gatm_ref,
                   scat_ref, wmat_ref, wvec_ref, out_ref):
    f32 = jnp.float32
    H = HIDDEN

    def mm(a, b):
        return jnp.dot(a, b, preferred_element_type=f32)

    wvec = wvec_ref[...]                                                     # (16, 128)

    # fused lin_src / lin_dst: one 128-lane projection matmul per node type
    proj_res = mm(x_res_ref[...], wmat_ref[ROW_PROJ_RES:ROW_PROJ_ATM, :])    # (N_RES, 128)
    proj_atm = mm(x_atm_ref[...], wmat_ref[ROW_PROJ_ATM:ROW_W1, :])          # (N_ATOM, 128)

    # all four lin_edge projections in one block-diagonal 128-lane matmul
    xe = mm(eattr_ref[...], wmat_ref[ROW_WEDGE:ROW_PROJ_RES, :])             # (E_PAD, 128)

    # GENConv messages: msg_e = relu(x_src[src_e] + lin_edge(e_attr)) + eps
    def messages(gath, xs, r):
        return jnp.maximum(mm(gath, xs) + xe[:, r * H:(r + 1) * H], 0.0) + EPS_GEN

    msg_rr = messages(gres_ref[0:E_PAD, :],         proj_res[:, 0:H],     0)
    msg_ra = messages(gres_ref[E_PAD:2 * E_PAD, :], proj_res[:, H:2 * H], 1)
    msg_ar = messages(gatm_ref[0:E_PAD, :],         proj_atm[:, 0:H],     2)
    msg_aa = messages(gatm_ref[E_PAD:2 * E_PAD, :], proj_atm[:, H:2 * H], 3)

    # scatter-add (aggr='add') via one-hot matmuls; padded edges hit zero cols
    s_res = scat_ref[0:N_RES, :]                     # cols [S_rr | S_ar]
    s_atm = scat_ref[N_RES:N_RES + N_ATOM, :]        # cols [S_ra | S_aa]
    agg_rr = mm(s_res[:, 0:E_PAD], msg_rr)           # (N_RES, H)
    agg_ar = mm(s_res[:, E_PAD:2 * E_PAD], msg_ar)
    agg_ra = mm(s_atm[:, 0:E_PAD], msg_ra)           # (N_ATOM, H)
    agg_aa = mm(s_atm[:, E_PAD:2 * E_PAD], msg_aa)

    # training-mode BatchNorm (two-pass, centered stats)
    def bn(x, gamma, beta):
        mu = jnp.mean(x, axis=0, keepdims=True)
        var = jnp.mean(jnp.square(x - mu), axis=0, keepdims=True)
        return (x - mu) * lax.rsqrt(var + EPS_BN) * gamma + beta

    # per-relation GENConv MLP: Linear(H->4H) -> BatchNorm -> ReLU -> Linear(4H->H)
    # (W2 is column-padded to 128 with exact zeros -> lane-dense everywhere)
    def gen_mlp(agg, xd, r):
        w1 = wmat_ref[ROW_W1 + r * H:ROW_W1 + (r + 1) * H, :]       # (H, 128)
        w2 = wmat_ref[ROW_W2 + r * HX:ROW_W2 + (r + 1) * HX, :]     # (128, 128)
        g1 = wvec[2 * r:2 * r + 1, :]
        b1 = wvec[2 * r + 1:2 * r + 2, :]
        h = jnp.maximum(bn(mm(agg + xd, w1), g1, b1), 0.0)          # (N, 128)
        return mm(h, w2)                                            # (N, 128); cols H: == 0

    # HeteroConv aggr='sum' over relations landing on each destination type
    y_res = gen_mlp(agg_rr, proj_res[:, 2 * H:3 * H], 0) + \
            gen_mlp(agg_ar, proj_res[:, 3 * H:4 * H], 2)            # (N_RES, 128)
    y_atm = gen_mlp(agg_ra, proj_atm[:, 2 * H:3 * H], 1) + \
            gen_mlp(agg_aa, proj_atm[:, 3 * H:4 * H], 3)            # (N_ATOM, 128)

    # shared BatchNorm1d(hidden), applied per node type (training-mode stats)
    # TODO(synk): BatchNorm running-statistics updates (training side effect)
    #   are not modeled; forward uses batch statistics, matching the module.
    bn_g = wvec[VEC_BN_G:VEC_BN_G + 1, :]
    bn_b = wvec[VEC_BN_B:VEC_BN_B + 1, :]
    res_bn = bn(y_res, bn_g, bn_b)
    atm_bn = bn(y_atm, bn_g, bn_b)

    # PyG Linear head on residue features (weights col-padded to 128 lanes)
    head = mm(res_bn, wmat_ref[ROW_LINW:ROW_LINW + HX, :]) + \
           wvec[VEC_LIN_B:VEC_LIN_B + 1, :]

    # lane-dense (·,128) output slab: rows 0:N_RES = head, rows N_RES: = atoms
    out_ref[0:N_RES, :] = head
    out_ref[N_RES:N_RES + N_ATOM, :] = atm_bn


# ---------------------------------------------------------------------------
# Operand packing: graph data + last-layer weights -> 8 kernel buffers.
# All padding blocks are exact zeros (contribute exactly 0 in f32).
# ---------------------------------------------------------------------------
def _pad2(x, rows, cols):
    return jnp.pad(x, ((0, rows - x.shape[0]), (0, cols - x.shape[1])))


def pack_operands(params, x_res, x_atom, edges, edge_attrs):
    # The module re-reads data.x_dict for every conv layer, so only the LAST
    # HeteroConv's output reaches self.lin -> pack only that layer's weights.
    layer = params["convs"][-1]
    n_of = {"residue": N_RES, "atom": N_ATOM}

    for rel in REL_ORDER:
        assert edges[rel][0].shape[0] <= E_PAD
        assert edge_attrs[rel].shape[1] == EDGE_FEAT[rel]

    # edge attributes -> one (E_PAD, 896) buffer, 128-aligned per-relation blocks
    eattr = jnp.concatenate(
        [_pad2(edge_attrs[rel], E_PAD, EDGE_PAD[rel]) for rel in REL_ORDER], axis=1)

    # dense one-hot gather / scatter operators (padded to E_PAD edges)
    gath, scat = {}, {}
    for rel, (st, dt) in EDGE_TYPES.items():
        src, dst = edges[rel]
        g = jax.nn.one_hot(src, n_of[st], dtype=jnp.float32)        # (E, N_src)
        s = jax.nn.one_hot(dst, n_of[dt], dtype=jnp.float32).T      # (N_dst, E)
        gath[rel] = _pad2(g, E_PAD, n_of[st])
        scat[rel] = _pad2(s, n_of[dt], E_PAD)
    gath_res = jnp.concatenate([gath["rr"], gath["ra"]], axis=0)    # (128, N_RES)
    gath_atm = jnp.concatenate([gath["ar"], gath["aa"]], axis=0)    # (128, N_ATOM)
    scat_pk = jnp.concatenate(
        [jnp.concatenate([scat["rr"], scat["ar"]], axis=1),         # residue destinations
         jnp.concatenate([scat["ra"], scat["aa"]], axis=1)],        # atom destinations
        axis=0)                                                     # (N_RES+N_ATOM, 128)

    # block-diagonal lin_edge weights (EW, 128)
    wedge = jnp.zeros((EW, LANE), jnp.float32)
    for r, rel in enumerate(REL_ORDER):
        w = layer[rel]["w_edge"]
        wedge = wedge.at[EDGE_OFF[rel]:EDGE_OFF[rel] + w.shape[0],
                         r * HIDDEN:(r + 1) * HIDDEN].set(w)

    # fused lin_src / lin_dst projections (per node type, 128 lanes)
    w_proj_res = jnp.concatenate([layer["rr"]["w_src"], layer["ra"]["w_src"],
                                  layer["rr"]["w_dst"], layer["ar"]["w_dst"]], axis=1)
    w_proj_atm = jnp.concatenate([layer["ar"]["w_src"], layer["aa"]["w_src"],
                                  layer["ra"]["w_dst"], layer["aa"]["w_dst"]], axis=1)

    w1_blk = jnp.concatenate([layer[rel]["w1"] for rel in REL_ORDER], axis=0)
    w2_blk = jnp.concatenate([_pad2(layer[rel]["w2"], HX, LANE) for rel in REL_ORDER],
                             axis=0)
    linw = _pad2(params["lin_w"], HX, LANE)

    wmat = jnp.concatenate([wedge, w_proj_res, w_proj_atm, w1_blk, w2_blk, linw], axis=0)
    assert wmat.shape == (WMAT_ROWS, LANE)

    vec_rows = []
    for rel in REL_ORDER:
        vec_rows += [layer[rel]["gamma1"], layer[rel]["beta1"]]      # (1, 128) each
    vec_rows += [_pad2(params["bn_gamma"], 1, LANE),
                 _pad2(params["bn_beta"], 1, LANE),
                 _pad2(params["lin_b"], 1, LANE)]
    wvec = jnp.concatenate(
        vec_rows + [jnp.zeros((VEC_ROWS - len(vec_rows), LANE), jnp.float32)], axis=0)

    return eattr, gath_res, gath_atm, scat_pk, wmat, wvec


# ---------------------------------------------------------------------------
# HeteroGNN forward: one pallas_call, single grid step, 8 input Refs, 1 output.
# ---------------------------------------------------------------------------
def hetero_gnn_forward(params, x_res, x_atom, edges, edge_attrs):
    eattr, gath_res, gath_atm, scat_pk, wmat, wvec = pack_operands(
        params, x_res, x_atom, edges, edge_attrs)

    inputs = (x_res, x_atom, eattr, gath_res, gath_atm, scat_pk, wmat, wvec)
    n_out = N_RES + N_ATOM

    out = pl.pallas_call(
        _hetero_kernel,
        out_shape=jax.ShapeDtypeStruct((n_out, LANE), jnp.float32),
        grid=(1,),
        in_specs=[pl.BlockSpec(a.shape, lambda i, nd=a.ndim: (0,) * nd) for a in inputs],
        out_specs=pl.BlockSpec((n_out, LANE), lambda i: (0, 0)),
        compiler_params=pltpu.CompilerParams(
            dimension_semantics=("arbitrary",),
            vmem_limit_bytes=32 * 1024 * 1024,
        ),
    )(*inputs)

    # module returns lin(x_dict['residue']); atom features returned for validation
    return out[:N_RES, :OUT], out[N_RES:, :HIDDEN]


# ---------------------------------------------------------------------------
# Parameter init (deterministic, synthetic — no checkpoint loading).
# ---------------------------------------------------------------------------
def init_params(key, f_res, f_atom, hidden, out_channels, num_layers):
    src_feat = {"rr": f_res, "ra": f_res, "ar": f_atom, "aa": f_atom}
    dst_feat = {"rr": f_res, "ra": f_atom, "ar": f_res, "aa": f_atom}

    def dense(k, shape):
        return jax.random.normal(k, shape, jnp.float32) / jnp.sqrt(float(shape[0]))

    convs = []
    for _ in range(num_layers):
        layer = {}
        for et in REL_ORDER:
            key, k0, k1, k2, k3, k4 = jax.random.split(key, 6)
            layer[et] = {
                "w_src": dense(k0, (src_feat[et], hidden)),
                "w_edge": dense(k1, (EDGE_FEAT[et], hidden)),
                "w_dst": dense(k2, (dst_feat[et], hidden)),
                "w1": dense(k3, (hidden, EXPANSION * hidden)),
                "gamma1": jnp.ones((1, EXPANSION * hidden), jnp.float32),
                "beta1": jnp.zeros((1, EXPANSION * hidden), jnp.float32),
                "w2": dense(k4, (EXPANSION * hidden, hidden)),
            }
        convs.append(layer)
    key, kw, kb = jax.random.split(key, 3)
    return {
        "convs": convs,
        "bn_gamma": jnp.ones((1, hidden), jnp.float32),
        "bn_beta": jnp.zeros((1, hidden), jnp.float32),
        "lin_w": dense(kw, (hidden, out_channels)),
        "lin_b": jax.random.normal(kb, (1, out_channels), jnp.float32) * 0.01,
    }


# ---------------------------------------------------------------------------
# Pure-JAX reference (index gather + segment_sum, per-relation un-fused math,
# loops over ALL layers exactly like the PyTorch forward).
# ---------------------------------------------------------------------------
def _genconv_ref(x_src, x_dst, edge_attr, src_idx, dst_idx, p):
    xs = x_src @ p["w_src"]
    xe = edge_attr @ p["w_edge"]
    msg = jnp.maximum(xs[src_idx] + xe, 0.0) + EPS_GEN
    agg = jax.ops.segment_sum(msg, dst_idx, num_segments=x_dst.shape[0])
    out = agg + x_dst @ p["w_dst"]
    h = out @ p["w1"]
    mu = h.mean(0, keepdims=True)
    var = ((h - mu) ** 2).mean(0, keepdims=True)
    h = jnp.maximum((h - mu) / jnp.sqrt(var + EPS_BN) * p["gamma1"] + p["beta1"], 0.0)
    return h @ p["w2"]


def _bn_ref(x, g, b):
    mu = x.mean(0, keepdims=True)
    var = ((x - mu) ** 2).mean(0, keepdims=True)
    return (x - mu) / jnp.sqrt(var + EPS_BN) * g + b


def reference_forward(params, x_res, x_atom, edges, edge_attrs):
    x_in = {"residue": x_res, "atom": x_atom}
    x_dict = None
    for layer in params["convs"]:
        outs = {et: _genconv_ref(x_in[st], x_in[dt], edge_attrs[et],
                                 edges[et][0], edges[et][1], layer[et])
                for et, (st, dt) in EDGE_TYPES.items()}
        x_dict = {
            "residue": _bn_ref(outs["rr"] + outs["ar"], params["bn_gamma"], params["bn_beta"]),
            "atom": _bn_ref(outs["ra"] + outs["aa"], params["bn_gamma"], params["bn_beta"]),
        }
    return x_dict["residue"] @ params["lin_w"] + params["lin_b"], x_dict["atom"]


# ---------------------------------------------------------------------------
if __name__ == "__main__":
    N_EDGES = {"rr": 48, "ra": 40, "ar": 40, "aa": 64}

    key = jax.random.PRNGKey(0)
    key, kx1, kx2 = jax.random.split(key, 3)
    x_res = jax.random.normal(kx1, (N_RES, F_RES), jnp.float32)
    x_atom = jax.random.normal(kx2, (N_ATOM, F_ATOM), jnp.float32)

    n_of = {"residue": N_RES, "atom": N_ATOM}
    edges, edge_attrs = {}, {}
    for et, (st, dt) in EDGE_TYPES.items():
        key, ks, kd, ka = jax.random.split(key, 4)
        src = jax.random.randint(ks, (N_EDGES[et],), 0, n_of[st])
        dst = jax.random.randint(kd, (N_EDGES[et],), 0, n_of[dt])
        edges[et] = (src, dst)
        edge_attrs[et] = jax.random.normal(ka, (N_EDGES[et], EDGE_FEAT[et]), jnp.float32)

    key, kp = jax.random.split(key)
    params = init_params(kp, F_RES, F_ATOM, HIDDEN, OUT, NUM_LAYERS)

    fwd = jax.jit(hetero_gnn_forward)
    out_head, out_atom = fwd(params, x_res, x_atom, edges, edge_attrs)
    out_head = jax.block_until_ready(out_head)

    ref_head, ref_atom = reference_forward(params, x_res, x_atom, edges, edge_attrs)
    assert out_head.shape == (N_RES, OUT)
    assert out_atom.shape == (N_ATOM, HIDDEN)
    err_head = float(jnp.max(jnp.abs(out_head - ref_head)))
    err_atom = float(jnp.max(jnp.abs(out_atom - ref_atom)))
    assert err_head < 2e-3, f"head mismatch vs reference: {err_head}"
    assert err_atom < 2e-3, f"atom-feature mismatch vs reference: {err_atom}"

    print("KERNEL_OK")
</pallas_src>

<mosaic_0001>
module attributes {stable_mosaic.version = 11 : i64} {
  func.func @_hetero_kernel(%arg0: i32, %arg1: memref<16x24xf32, #tpu.memory_space<vmem>>, %arg2: memref<24x16xf32, #tpu.memory_space<vmem>>, %arg3: memref<64x896xf32, #tpu.memory_space<vmem>>, %arg4: memref<128x16xf32, #tpu.memory_space<vmem>>, %arg5: memref<128x24xf32, #tpu.memory_space<vmem>>, %arg6: memref<40x128xf32, #tpu.memory_space<vmem>>, %arg7: memref<1704x128xf32, #tpu.memory_space<vmem>>, %arg8: memref<16x128xf32, #tpu.memory_space<vmem>>, %arg9: memref<40x128xf32, #tpu.memory_space<vmem>>) attributes {dimension_semantics = [#tpu.dimension_semantics<arbitrary>], iteration_bounds = array<i64: 1>, scalar_prefetch = 0 : i64, scratch_operands = 0 : i64, tpu.core_type = #tpu.core_type<tc>, window_params = [{pipeline_mode = #tpu.pipeline_mode<synchronous>, transform_indices = @transform_0, window_bounds = array<i64: 16, 24>}, {pipeline_mode = #tpu.pipeline_mode<synchronous>, transform_indices = @transform_1, window_bounds = array<i64: 24, 16>}, {pipeline_mode = #tpu.pipeline_mode<synchronous>, transform_indices = @transform_2, window_bounds = array<i64: 64, 896>}, {pipeline_mode = #tpu.pipeline_mode<synchronous>, transform_indices = @transform_3, window_bounds = array<i64: 128, 16>}, {pipeline_mode = #tpu.pipeline_mode<synchronous>, transform_indices = @transform_4, window_bounds = array<i64: 128, 24>}, {pipeline_mode = #tpu.pipeline_mode<synchronous>, transform_indices = @transform_5, window_bounds = array<i64: 40, 128>}, {pipeline_mode = #tpu.pipeline_mode<synchronous>, transform_indices = @transform_6, window_bounds = array<i64: 1704, 128>}, {pipeline_mode = #tpu.pipeline_mode<synchronous>, transform_indices = @transform_7, window_bounds = array<i64: 16, 128>}, {pipeline_mode = #tpu.pipeline_mode<synchronous>, transform_indices = @transform_8, window_bounds = array<i64: 40, 128>}]} {
    %c0 = arith.constant 0 : index
    %c0_0 = arith.constant 0 : index
    %0 = vector.load %arg8[%c0, %c0_0] : memref<16x128xf32, #tpu.memory_space<vmem>>, vector<16x128xf32>
    %c0_1 = arith.constant 0 : index
    %c0_2 = arith.constant 0 : index
    %1 = vector.load %arg1[%c0_1, %c0_2] : memref<16x24xf32, #tpu.memory_space<vmem>>, vector<16x24xf32>
    %c896 = arith.constant 896 : index
    %c0_3 = arith.constant 0 : index
    %2 = vector.load %arg7[%c896, %c0_3] : memref<1704x128xf32, #tpu.memory_space<vmem>>, vector<24x128xf32>
    %cst = arith.constant dense<0.000000e+00> : vector<16x128xf32>
    %3 = tpu.matmul %1, %2, %cst {dimension_numbers = #tpu.dot_dimension_numbers<[1], [0], [0], [1], [0, 0, 1, 1], [], []>} : vector<16x24xf32>, vector<24x128xf32>, vector<16x128xf32> -> vector<16x128xf32>
    %c0_4 = arith.constant 0 : index
    %c0_5 = arith.constant 0 : index
    %4 = vector.load %arg2[%c0_4, %c0_5] : memref<24x16xf32, #tpu.memory_space<vmem>>, vector<24x16xf32>
    %c920 = arith.constant 920 : index
    %c0_6 = arith.constant 0 : index
    %5 = vector.load %arg7[%c920, %c0_6] : memref<1704x128xf32, #tpu.memory_space<vmem>>, vector<16x128xf32>
    %cst_7 = arith.constant dense<0.000000e+00> : vector<24x128xf32>
    %6 = tpu.matmul %4, %5, %cst_7 {dimension_numbers = #tpu.dot_dimension_numbers<[1], [0], [0], [1], [0, 0, 1, 1], [], []>} : vector<24x16xf32>, vector<16x128xf32>, vector<24x128xf32> -> vector<24x128xf32>
    %c0_8 = arith.constant 0 : index
    %c0_9 = arith.constant 0 : index
    %7 = vector.load %arg3[%c0_8, %c0_9] : memref<64x896xf32, #tpu.memory_space<vmem>>, vector<64x896xf32>
    %c0_10 = arith.constant 0 : index
    %c0_11 = arith.constant 0 : index
    %8 = vector.load %arg7[%c0_10, %c0_11] : memref<1704x128xf32, #tpu.memory_space<vmem>>, vector<896x128xf32>
    %cst_12 = arith.constant dense<0.000000e+00> : vector<64x128xf32>
    %9 = tpu.matmul %7, %8, %cst_12 {dimension_numbers = #tpu.dot_dimension_numbers<[1], [0], [0], [1], [0, 0, 1, 1], [], []>} : vector<64x896xf32>, vector<896x128xf32>, vector<64x128xf32> -> vector<64x128xf32>
    %c0_13 = arith.constant 0 : index
    %c0_14 = arith.constant 0 : index
    %10 = vector.load %arg4[%c0_13, %c0_14] : memref<128x16xf32, #tpu.memory_space<vmem>>, vector<64x16xf32>
    %11 = vector.extract_strided_slice %3 {offsets = [0, 0], sizes = [16, 32], strides = [1, 1]} : vector<16x128xf32> to vector<16x32xf32>
    %cst_15 = arith.constant dense<0.000000e+00> : vector<64x32xf32>
    %12 = tpu.matmul %10, %11, %cst_15 {dimension_numbers = #tpu.dot_dimension_numbers<[1], [0], [0], [1], [0, 0, 1, 1], [], []>} : vector<64x16xf32>, vector<16x32xf32>, vector<64x32xf32> -> vector<64x32xf32>
    %13 = vector.extract_strided_slice %9 {offsets = [0, 0], sizes = [64, 32], strides = [1, 1]} : vector<64x128xf32> to vector<64x32xf32>
    %14 = arith.addf %12, %13 : vector<64x32xf32>
    %cst_16 = arith.constant 0.000000e+00 : f32
    %15 = vector.broadcast %cst_16 : f32 to vector<64x32xf32>
    %16 = arith.maximumf %14, %15 : vector<64x32xf32>
    %cst_17 = arith.constant 1.000000e-07 : f32
    %17 = vector.broadcast %cst_17 : f32 to vector<64x32xf32>
    %18 = arith.addf %16, %17 : vector<64x32xf32>
    %c64 = arith.constant 64 : index
    %c0_18 = arith.constant 0 : index
    %19 = vector.load %arg4[%c64, %c0_18] : memref<128x16xf32, #tpu.memory_space<vmem>>, vector<64x16xf32>
    %20 = vector.extract_strided_slice %3 {offsets = [0, 32], sizes = [16, 32], strides = [1, 1]} : vector<16x128xf32> to vector<16x32xf32>
    %cst_19 = arith.constant dense<0.000000e+00> : vector<64x32xf32>
    %21 = tpu.matmul %19, %20, %cst_19 {dimension_numbers = #tpu.dot_dimension_numbers<[1], [0], [0], [1], [0, 0, 1, 1], [], []>} : vector<64x16xf32>, vector<16x32xf32>, vector<64x32xf32> -> vector<64x32xf32>
    %22 = vector.extract_strided_slice %9 {offsets = [0, 32], sizes = [64, 32], strides = [1, 1]} : vector<64x128xf32> to vector<64x32xf32>
    %23 = arith.addf %21, %22 : vector<64x32xf32>
    %cst_20 = arith.constant 0.000000e+00 : f32
    %24 = vector.broadcast %cst_20 : f32 to vector<64x32xf32>
    %25 = arith.maximumf %23, %24 : vector<64x32xf32>
    %cst_21 = arith.constant 1.000000e-07 : f32
    %26 = vector.broadcast %cst_21 : f32 to vector<64x32xf32>
    %27 = arith.addf %25, %26 : vector<64x32xf32>
    %c0_22 = arith.constant 0 : index
    %c0_23 = arith.constant 0 : index
    %28 = vector.load %arg5[%c0_22, %c0_23] : memref<128x24xf32, #tpu.memory_space<vmem>>, vector<64x24xf32>
    %29 = vector.extract_strided_slice %6 {offsets = [0, 0], sizes = [24, 32], strides = [1, 1]} : vector<24x128xf32> to vector<24x32xf32>
    %cst_24 = arith.constant dense<0.000000e+00> : vector<64x32xf32>
    %30 = tpu.matmul %28, %29, %cst_24 {dimension_numbers = #tpu.dot_dimension_numbers<[1], [0], [0], [1], [0, 0, 1, 1], [], []>} : vector<64x24xf32>, vector<24x32xf32>, vector<64x32xf32> -> vector<64x32xf32>
    %31 = vector.extract_strided_slice %9 {offsets = [0, 64], sizes = [64, 32], strides = [1, 1]} : vector<64x128xf32> to vector<64x32xf32>
    %32 = arith.addf %30, %31 : vector<64x32xf32>
    %cst_25 = arith.constant 0.000000e+00 : f32
    %33 = vector.broadcast %cst_25 : f32 to vector<64x32xf32>
    %34 = arith.maximumf %32, %33 : vector<64x32xf32>
    %cst_26 = arith.constant 1.000000e-07 : f32
    %35 = vector.broadcast %cst_26 : f32 to vector<64x32xf32>
    %36 = arith.addf %34, %35 : vector<64x32xf32>
    %c64_27 = arith.constant 64 : index
    %c0_28 = arith.constant 0 : index
    %37 = vector.load %arg5[%c64_27, %c0_28] : memref<128x24xf32, #tpu.memory_space<vmem>>, vector<64x24xf32>
    %38 = vector.extract_strided_slice %6 {offsets = [0, 32], sizes = [24, 32], strides = [1, 1]} : vector<24x128xf32> to vector<24x32xf32>
    %cst_29 = arith.constant dense<0.000000e+00> : vector<64x32xf32>
    %39 = tpu.matmul %37, %38, %cst_29 {dimension_numbers = #tpu.dot_dimension_numbers<[1], [0], [0], [1], [0, 0, 1, 1], [], []>} : vector<64x24xf32>, vector<24x32xf32>, vector<64x32xf32> -> vector<64x32xf32>
    %40 = vector.extract_strided_slice %9 {offsets = [0, 96], sizes = [64, 32], strides = [1, 1]} : vector<64x128xf32> to vector<64x32xf32>
    %41 = arith.addf %39, %40 : vector<64x32xf32>
    %cst_30 = arith.constant 0.000000e+00 : f32
    %42 = vector.broadcast %cst_30 : f32 to vector<64x32xf32>
    %43 = arith.maximumf %41, %42 : vector<64x32xf32>
    %cst_31 = arith.constant 1.000000e-07 : f32
    %44 = vector.broadcast %cst_31 : f32 to vector<64x32xf32>
    %45 = arith.addf %43, %44 : vector<64x32xf32>
    %c0_32 = arith.constant 0 : index
    %c0_33 = arith.constant 0 : index
    %46 = vector.load %arg6[%c0_32, %c0_33] : memref<40x128xf32, #tpu.memory_space<vmem>>, vector<16x128xf32>
    %c16 = arith.constant 16 : index
    %c0_34 = arith.constant 0 : index
    %47 = vector.load %arg6[%c16, %c0_34] : memref<40x128xf32, #tpu.memory_space<vmem>>, vector<24x128xf32>
    %48 = vector.extract_strided_slice %46 {offsets = [0, 0], sizes = [16, 64], strides = [1, 1]} : vector<16x128xf32> to vector<16x64xf32>
    %cst_35 = arith.constant dense<0.000000e+00> : vector<16x32xf32>
    %49 = tpu.matmul %48, %18, %cst_35 {dimension_numbers = #tpu.dot_dimension_numbers<[1], [0], [0], [1], [0, 0, 1, 1], [], []>} : vector<16x64xf32>, vector<64x32xf32>, vector<16x32xf32> -> vector<16x32xf32>
    %50 = vector.extract_strided_slice %46 {offsets = [0, 64], sizes = [16, 64], strides = [1, 1]} : vector<16x128xf32> to vector<16x64xf32>
    %cst_36 = arith.constant dense<0.000000e+00> : vector<16x32xf32>
    %51 = tpu.matmul %50, %36, %cst_36 {dimension_numbers = #tpu.dot_dimension_numbers<[1], [0], [0], [1], [0, 0, 1, 1], [], []>} : vector<16x64xf32>, vector<64x32xf32>, vector<16x32xf32> -> vector<16x32xf32>
    %52 = vector.extract_strided_slice %47 {offsets = [0, 0], sizes = [24, 64], strides = [1, 1]} : vector<24x128xf32> to vector<24x64xf32>
    %cst_37 = arith.constant dense<0.000000e+00> : vector<24x32xf32>
    %53 = tpu.matmul %52, %27, %cst_37 {dimension_numbers = #tpu.dot_dimension_numbers<[1], [0], [0], [1], [0, 0, 1, 1], [], []>} : vector<24x64xf32>, vector<64x32xf32>, vector<24x32xf32> -> vector<24x32xf32>
    %54 = vector.extract_strided_slice %47 {offsets = [0, 64], sizes = [24, 64], strides = [1, 1]} : vector<24x128xf32> to vector<24x64xf32>
    %cst_38 = arith.constant dense<0.000000e+00> : vector<24x32xf32>
    %55 = tpu.matmul %54, %45, %cst_38 {dimension_numbers = #tpu.dot_dimension_numbers<[1], [0], [0], [1], [0, 0, 1, 1], [], []>} : vector<24x64xf32>, vector<64x32xf32>, vector<24x32xf32> -> vector<24x32xf32>
    %56 = vector.extract_strided_slice %3 {offsets = [0, 64], sizes = [16, 32], strides = [1, 1]} : vector<16x128xf32> to vector<16x32xf32>
    %c936 = arith.constant 936 : index
    %c0_39 = arith.constant 0 : index
    %57 = vector.load %arg7[%c936, %c0_39] : memref<1704x128xf32, #tpu.memory_space<vmem>>, vector<32x128xf32>
    %c1064 = arith.constant 1064 : index
    %c0_40 = arith.constant 0 : index
    %58 = vector.load %arg7[%c1064, %c0_40] : memref<1704x128xf32, #tpu.memory_space<vmem>>, vector<128x128xf32>
    %59 = vector.extract_strided_slice %0 {offsets = [0, 0], sizes = [1, 128], strides = [1, 1]} : vector<16x128xf32> to vector<1x128xf32>
    %60 = vector.extract_strided_slice %0 {offsets = [1, 0], sizes = [1, 128], strides = [1, 1]} : vector<16x128xf32> to vector<1x128xf32>
    %61 = arith.addf %49, %56 : vector<16x32xf32>
    %cst_41 = arith.constant dense<0.000000e+00> : vector<16x128xf32>
    %62 = tpu.matmul %61, %57, %cst_41 {dimension_numbers = #tpu.dot_dimension_numbers<[1], [0], [0], [1], [0, 0, 1, 1], [], []>} : vector<16x32xf32>, vector<32x128xf32>, vector<16x128xf32> -> vector<16x128xf32>
    %cst_42 = arith.constant dense<0.000000e+00> : vector<128xf32>
    %63 = vector.multi_reduction <add>, %62, %cst_42 [0] : vector<16x128xf32> to vector<128xf32>
    %64 = vector.shape_cast %63 : vector<128xf32> to vector<1x128xf32>
    %cst_43 = arith.constant 1.600000e+01 : f32
    %65 = vector.broadcast %cst_43 : f32 to vector<1x128xf32>
    %66 = arith.divf %64, %65 : vector<1x128xf32>
    %67 = vector.broadcast %66 : vector<1x128xf32> to vector<16x128xf32>
    %68 = arith.subf %62, %67 : vector<16x128xf32>
    %69 = arith.mulf %68, %68 : vector<16x128xf32>
    %cst_44 = arith.constant dense<0.000000e+00> : vector<128xf32>
    %70 = vector.multi_reduction <add>, %69, %cst_44 [0] : vector<16x128xf32> to vector<128xf32>
    %71 = vector.shape_cast %70 : vector<128xf32> to vector<1x128xf32>
    %cst_45 = arith.constant 1.600000e+01 : f32
    %72 = vector.broadcast %cst_45 : f32 to vector<1x128xf32>
    %73 = arith.divf %71, %72 : vector<1x128xf32>
    %74 = vector.broadcast %66 : vector<1x128xf32> to vector<16x128xf32>
    %75 = arith.subf %62, %74 : vector<16x128xf32>
    %cst_46 = arith.constant 9.99999974E-6 : f32
    %76 = vector.broadcast %cst_46 : f32 to vector<1x128xf32>
    %77 = arith.addf %73, %76 : vector<1x128xf32>
    %78 = math.rsqrt %77 : vector<1x128xf32>
    %79 = vector.broadcast %78 : vector<1x128xf32> to vector<16x128xf32>
    %80 = arith.mulf %75, %79 : vector<16x128xf32>
    %81 = vector.broadcast %59 : vector<1x128xf32> to vector<16x128xf32>
    %82 = arith.mulf %80, %81 : vector<16x128xf32>
    %83 = vector.broadcast %60 : vector<1x128xf32> to vector<16x128xf32>
    %84 = arith.addf %82, %83 : vector<16x128xf32>
    %cst_47 = arith.constant 0.000000e+00 : f32
    %85 = vector.broadcast %cst_47 : f32 to vector<16x128xf32>
    %86 = arith.maximumf %84, %85 : vector<16x128xf32>
    %cst_48 = arith.constant dense<0.000000e+00> : vector<16x128xf32>
    %87 = tpu.matmul %86, %58, %cst_48 {dimension_numbers = #tpu.dot_dimension_numbers<[1], [0], [0], [1], [0, 0, 1, 1], [], []>} : vector<16x128xf32>, vector<128x128xf32>, vector<16x128xf32> -> vector<16x128xf32>
    %88 = vector.extract_strided_slice %3 {offsets = [0, 96], sizes = [16, 32], strides = [1, 1]} : vector<16x128xf32> to vector<16x32xf32>
    %c1000 = arith.constant 1000 : index
    %c0_49 = arith.constant 0 : index
    %89 = vector.load %arg7[%c1000, %c0_49] : memref<1704x128xf32, #tpu.memory_space<vmem>>, vector<32x128xf32>
    %c1320 = arith.constant 1320 : index
    %c0_50 = arith.constant 0 : index
    %90 = vector.load %arg7[%c1320, %c0_50] : memref<1704x128xf32, #tpu.memory_space<vmem>>, vector<128x128xf32>
    %91 = vector.extract_strided_slice %0 {offsets = [4, 0], sizes = [1, 128], strides = [1, 1]} : vector<16x128xf32> to vector<1x128xf32>
    %92 = vector.extract_strided_slice %0 {offsets = [5, 0], sizes = [1, 128], strides = [1, 1]} : vector<16x128xf32> to vector<1x128xf32>
    %93 = arith.addf %51, %88 : vector<16x32xf32>
    %cst_51 = arith.constant dense<0.000000e+00> : vector<16x128xf32>
    %94 = tpu.matmul %93, %89, %cst_51 {dimension_numbers = #tpu.dot_dimension_numbers<[1], [0], [0], [1], [0, 0, 1, 1], [], []>} : vector<16x32xf32>, vector<32x128xf32>, vector<16x128xf32> -> vector<16x128xf32>
    %cst_52 = arith.constant dense<0.000000e+00> : vector<128xf32>
    %95 = vector.multi_reduction <add>, %94, %cst_52 [0] : vector<16x128xf32> to vector<128xf32>
    %96 = vector.shape_cast %95 : vector<128xf32> to vector<1x128xf32>
    %cst_53 = arith.constant 1.600000e+01 : f32
    %97 = vector.broadcast %cst_53 : f32 to vector<1x128xf32>
    %98 = arith.divf %96, %97 : vector<1x128xf32>
    %99 = vector.broadcast %98 : vector<1x128xf32> to vector<16x128xf32>
    %100 = arith.subf %94, %99 : vector<16x128xf32>
    %101 = arith.mulf %100, %100 : vector<16x128xf32>
    %cst_54 = arith.constant dense<0.000000e+00> : vector<128xf32>
    %102 = vector.multi_reduction <add>, %101, %cst_54 [0] : vector<16x128xf32> to vector<128xf32>
    %103 = vector.shape_cast %102 : vector<128xf32> to vector<1x128xf32>
    %cst_55 = arith.constant 1.600000e+01 : f32
    %104 = vector.broadcast %cst_55 : f32 to vector<1x128xf32>
    %105 = arith.divf %103, %104 : vector<1x128xf32>
    %106 = vector.broadcast %98 : vector<1x128xf32> to vector<16x128xf32>
    %107 = arith.subf %94, %106 : vector<16x128xf32>
    %cst_56 = arith.constant 9.99999974E-6 : f32
    %108 = vector.broadcast %cst_56 : f32 to vector<1x128xf32>
    %109 = arith.addf %105, %108 : vector<1x128xf32>
    %110 = math.rsqrt %109 : vector<1x128xf32>
    %111 = vector.broadcast %110 : vector<1x128xf32> to vector<16x128xf32>
    %112 = arith.mulf %107, %111 : vector<16x128xf32>
    %113 = vector.broadcast %91 : vector<1x128xf32> to vector<16x128xf32>
    %114 = arith.mulf %112, %113 : vector<16x128xf32>
    %115 = vector.broadcast %92 : vector<1x128xf32> to vector<16x128xf32>
    %116 = arith.addf %114, %115 : vector<16x128xf32>
    %cst_57 = arith.constant 0.000000e+00 : f32
    %117 = vector.broadcast %cst_57 : f32 to vector<16x128xf32>
    %118 = arith.maximumf %116, %117 : vector<16x128xf32>
    %cst_58 = arith.constant dense<0.000000e+00> : vector<16x128xf32>
    %119 = tpu.matmul %118, %90, %cst_58 {dimension_numbers = #tpu.dot_dimension_numbers<[1], [0], [0], [1], [0, 0, 1, 1], [], []>} : vector<16x128xf32>, vector<128x128xf32>, vector<16x128xf32> -> vector<16x128xf32>
    %120 = arith.addf %87, %119 : vector<16x128xf32>
    %121 = vector.extract_strided_slice %6 {offsets = [0, 64], sizes = [24, 32], strides = [1, 1]} : vector<24x128xf32> to vector<24x32xf32>
    %c968 = arith.constant 968 : index
    %c0_59 = arith.constant 0 : index
    %122 = vector.load %arg7[%c968, %c0_59] : memref<1704x128xf32, #tpu.memory_space<vmem>>, vector<32x128xf32>
    %c1192 = arith.constant 1192 : index
    %c0_60 = arith.constant 0 : index
    %123 = vector.load %arg7[%c1192, %c0_60] : memref<1704x128xf32, #tpu.memory_space<vmem>>, vector<128x128xf32>
    %124 = vector.extract_strided_slice %0 {offsets = [2, 0], sizes = [1, 128], strides = [1, 1]} : vector<16x128xf32> to vector<1x128xf32>
    %125 = vector.extract_strided_slice %0 {offsets = [3, 0], sizes = [1, 128], strides = [1, 1]} : vector<16x128xf32> to vector<1x128xf32>
    %126 = arith.addf %53, %121 : vector<24x32xf32>
    %cst_61 = arith.constant dense<0.000000e+00> : vector<24x128xf32>
    %127 = tpu.matmul %126, %122, %cst_61 {dimension_numbers = #tpu.dot_dimension_numbers<[1], [0], [0], [1], [0, 0, 1, 1], [], []>} : vector<24x32xf32>, vector<32x128xf32>, vector<24x128xf32> -> vector<24x128xf32>
    %cst_62 = arith.constant dense<0.000000e+00> : vector<128xf32>
    %128 = vector.multi_reduction <add>, %127, %cst_62 [0] : vector<24x128xf32> to vector<128xf32>
    %129 = vector.shape_cast %128 : vector<128xf32> to vector<1x128xf32>
    %cst_63 = arith.constant 2.400000e+01 : f32
    %130 = vector.broadcast %cst_63 : f32 to vector<1x128xf32>
    %131 = arith.divf %129, %130 : vector<1x128xf32>
    %132 = vector.broadcast %131 : vector<1x128xf32> to vector<24x128xf32>
    %133 = arith.subf %127, %132 : vector<24x128xf32>
    %134 = arith.mulf %133, %133 : vector<24x128xf32>
    %cst_64 = arith.constant dense<0.000000e+00> : vector<128xf32>
    %135 = vector.multi_reduction <add>, %134, %cst_64 [0] : vector<24x128xf32> to vector<128xf32>
    %136 = vector.shape_cast %135 : vector<128xf32> to vector<1x128xf32>
    %cst_65 = arith.constant 2.400000e+01 : f32
    %137 = vector.broadcast %cst_65 : f32 to vector<1x128xf32>
    %138 = arith.divf %136, %137 : vector<1x128xf32>
    %139 = vector.broadcast %131 : vector<1x128xf32> to vector<24x128xf32>
    %140 = arith.subf %127, %139 : vector<24x128xf32>
    %cst_66 = arith.constant 9.99999974E-6 : f32
    %141 = vector.broadcast %cst_66 : f32 to vector<1x128xf32>
    %142 = arith.addf %138, %141 : vector<1x128xf32>
    %143 = math.rsqrt %142 : vector<1x128xf32>
    %144 = vector.broadcast %143 : vector<1x128xf32> to vector<24x128xf32>
    %145 = arith.mulf %140, %144 : vector<24x128xf32>
    %146 = vector.broadcast %124 : vector<1x128xf32> to vector<24x128xf32>
    %147 = arith.mulf %145, %146 : vector<24x128xf32>
    %148 = vector.broadcast %125 : vector<1x128xf32> to vector<24x128xf32>
    %149 = arith.addf %147, %148 : vector<24x128xf32>
    %cst_67 = arith.constant 0.000000e+00 : f32
    %150 = vector.broadcast %cst_67 : f32 to vector<24x128xf32>
    %151 = arith.maximumf %149, %150 : vector<24x128xf32>
    %cst_68 = arith.constant dense<0.000000e+00> : vector<24x128xf32>
    %152 = tpu.matmul %151, %123, %cst_68 {dimension_numbers = #tpu.dot_dimension_numbers<[1], [0], [0], [1], [0, 0, 1, 1], [], []>} : vector<24x128xf32>, vector<128x128xf32>, vector<24x128xf32> -> vector<24x128xf32>
    %153 = vector.extract_strided_slice %6 {offsets = [0, 96], sizes = [24, 32], strides = [1, 1]} : vector<24x128xf32> to vector<24x32xf32>
    %c1032 = arith.constant 1032 : index
    %c0_69 = arith.constant 0 : index
    %154 = vector.load %arg7[%c1032, %c0_69] : memref<1704x128xf32, #tpu.memory_space<vmem>>, vector<32x128xf32>
    %c1448 = arith.constant 1448 : index
    %c0_70 = arith.constant 0 : index
    %155 = vector.load %arg7[%c1448, %c0_70] : memref<1704x128xf32, #tpu.memory_space<vmem>>, vector<128x128xf32>
    %156 = vector.extract_strided_slice %0 {offsets = [6, 0], sizes = [1, 128], strides = [1, 1]} : vector<16x128xf32> to vector<1x128xf32>
    %157 = vector.extract_strided_slice %0 {offsets = [7, 0], sizes = [1, 128], strides = [1, 1]} : vector<16x128xf32> to vector<1x128xf32>
    %158 = arith.addf %55, %153 : vector<24x32xf32>
    %cst_71 = arith.constant dense<0.000000e+00> : vector<24x128xf32>
    %159 = tpu.matmul %158, %154, %cst_71 {dimension_numbers = #tpu.dot_dimension_numbers<[1], [0], [0], [1], [0, 0, 1, 1], [], []>} : vector<24x32xf32>, vector<32x128xf32>, vector<24x128xf32> -> vector<24x128xf32>
    %cst_72 = arith.constant dense<0.000000e+00> : vector<128xf32>
    %160 = vector.multi_reduction <add>, %159, %cst_72 [0] : vector<24x128xf32> to vector<128xf32>
    %161 = vector.shape_cast %160 : vector<128xf32> to vector<1x128xf32>
    %cst_73 = arith.constant 2.400000e+01 : f32
    %162 = vector.broadcast %cst_73 : f32 to vector<1x128xf32>
    %163 = arith.divf %161, %162 : vector<1x128xf32>
    %164 = vector.broadcast %163 : vector<1x128xf32> to vector<24x128xf32>
    %165 = arith.subf %159, %164 : vector<24x128xf32>
    %166 = arith.mulf %165, %165 : vector<24x128xf32>
    %cst_74 = arith.constant dense<0.000000e+00> : vector<128xf32>
    %167 = vector.multi_reduction <add>, %166, %cst_74 [0] : vector<24x128xf32> to vector<128xf32>
    %168 = vector.shape_cast %167 : vector<128xf32> to vector<1x128xf32>
    %cst_75 = arith.constant 2.400000e+01 : f32
    %169 = vector.broadcast %cst_75 : f32 to vector<1x128xf32>
    %170 = arith.divf %168, %169 : vector<1x128xf32>
    %171 = vector.broadcast %163 : vector<1x128xf32> to vector<24x128xf32>
    %172 = arith.subf %159, %171 : vector<24x128xf32>
    %cst_76 = arith.constant 9.99999974E-6 : f32
    %173 = vector.broadcast %cst_76 : f32 to vector<1x128xf32>
    %174 = arith.addf %170, %173 : vector<1x128xf32>
    %175 = math.rsqrt %174 : vector<1x128xf32>
    %176 = vector.broadcast %175 : vector<1x128xf32> to vector<24x128xf32>
    %177 = arith.mulf %172, %176 : vector<24x128xf32>
    %178 = vector.broadcast %156 : vector<1x128xf32> to vector<24x128xf32>
    %179 = arith.mulf %177, %178 : vector<24x128xf32>
    %180 = vector.broadcast %157 : vector<1x128xf32> to vector<24x128xf32>
    %181 = arith.addf %179, %180 : vector<24x128xf32>
    %cst_77 = arith.constant 0.000000e+00 : f32
    %182 = vector.broadcast %cst_77 : f32 to vector<24x128xf32>
    %183 = arith.maximumf %181, %182 : vector<24x128xf32>
    %cst_78 = arith.constant dense<0.000000e+00> : vector<24x128xf32>
    %184 = tpu.matmul %183, %155, %cst_78 {dimension_numbers = #tpu.dot_dimension_numbers<[1], [0], [0], [1], [0, 0, 1, 1], [], []>} : vector<24x128xf32>, vector<128x128xf32>, vector<24x128xf32> -> vector<24x128xf32>
    %185 = arith.addf %152, %184 : vector<24x128xf32>
    %186 = vector.extract_strided_slice %0 {offsets = [8, 0], sizes = [1, 128], strides = [1, 1]} : vector<16x128xf32> to vector<1x128xf32>
    %187 = vector.extract_strided_slice %0 {offsets = [9, 0], sizes = [1, 128], strides = [1, 1]} : vector<16x128xf32> to vector<1x128xf32>
    %cst_79 = arith.constant dense<0.000000e+00> : vector<128xf32>
    %188 = vector.multi_reduction <add>, %120, %cst_79 [0] : vector<16x128xf32> to vector<128xf32>
    %189 = vector.shape_cast %188 : vector<128xf32> to vector<1x128xf32>
    %cst_80 = arith.constant 1.600000e+01 : f32
    %190 = vector.broadcast %cst_80 : f32 to vector<1x128xf32>
    %191 = arith.divf %189, %190 : vector<1x128xf32>
    %192 = vector.broadcast %191 : vector<1x128xf32> to vector<16x128xf32>
    %193 = arith.subf %120, %192 : vector<16x128xf32>
    %194 = arith.mulf %193, %193 : vector<16x128xf32>
    %cst_81 = arith.constant dense<0.000000e+00> : vector<128xf32>
    %195 = vector.multi_reduction <add>, %194, %cst_81 [0] : vector<16x128xf32> to vector<128xf32>
    %196 = vector.shape_cast %195 : vector<128xf32> to vector<1x128xf32>
    %cst_82 = arith.constant 1.600000e+01 : f32
    %197 = vector.broadcast %cst_82 : f32 to vector<1x128xf32>
    %198 = arith.divf %196, %197 : vector<1x128xf32>
    %199 = vector.broadcast %191 : vector<1x128xf32> to vector<16x128xf32>
    %200 = arith.subf %120, %199 : vector<16x128xf32>
    %cst_83 = arith.constant 9.99999974E-6 : f32
    %201 = vector.broadcast %cst_83 : f32 to vector<1x128xf32>
    %202 = arith.addf %198, %201 : vector<1x128xf32>
    %203 = math.rsqrt %202 : vector<1x128xf32>
    %204 = vector.broadcast %203 : vector<1x128xf32> to vector<16x128xf32>
    %205 = arith.mulf %200, %204 : vector<16x128xf32>
    %206 = vector.broadcast %186 : vector<1x128xf32> to vector<16x128xf32>
    %207 = arith.mulf %205, %206 : vector<16x128xf32>
    %208 = vector.broadcast %187 : vector<1x128xf32> to vector<16x128xf32>
    %209 = arith.addf %207, %208 : vector<16x128xf32>
    %cst_84 = arith.constant dense<0.000000e+00> : vector<128xf32>
    %210 = vector.multi_reduction <add>, %185, %cst_84 [0] : vector<24x128xf32> to vector<128xf32>
    %211 = vector.shape_cast %210 : vector<128xf32> to vector<1x128xf32>
    %cst_85 = arith.constant 2.400000e+01 : f32
    %212 = vector.broadcast %cst_85 : f32 to vector<1x128xf32>
    %213 = arith.divf %211, %212 : vector<1x128xf32>
    %214 = vector.broadcast %213 : vector<1x128xf32> to vector<24x128xf32>
    %215 = arith.subf %185, %214 : vector<24x128xf32>
    %216 = arith.mulf %215, %215 : vector<24x128xf32>
    %cst_86 = arith.constant dense<0.000000e+00> : vector<128xf32>
    %217 = vector.multi_reduction <add>, %216, %cst_86 [0] : vector<24x128xf32> to vector<128xf32>
    %218 = vector.shape_cast %217 : vector<128xf32> to vector<1x128xf32>
    %cst_87 = arith.constant 2.400000e+01 : f32
    %219 = vector.broadcast %cst_87 : f32 to vector<1x128xf32>
    %220 = arith.divf %218, %219 : vector<1x128xf32>
    %221 = vector.broadcast %213 : vector<1x128xf32> to vector<24x128xf32>
    %222 = arith.subf %185, %221 : vector<24x128xf32>
    %cst_88 = arith.constant 9.99999974E-6 : f32
    %223 = vector.broadcast %cst_88 : f32 to vector<1x128xf32>
    %224 = arith.addf %220, %223 : vector<1x128xf32>
    %225 = math.rsqrt %224 : vector<1x128xf32>
    %226 = vector.broadcast %225 : vector<1x128xf32> to vector<24x128xf32>
    %227 = arith.mulf %222, %226 : vector<24x128xf32>
    %228 = vector.broadcast %186 : vector<1x128xf32> to vector<24x128xf32>
    %229 = arith.mulf %227, %228 : vector<24x128xf32>
    %230 = vector.broadcast %187 : vector<1x128xf32> to vector<24x128xf32>
    %231 = arith.addf %229, %230 : vector<24x128xf32>
    %c1576 = arith.constant 1576 : index
    %c0_89 = arith.constant 0 : index
    %232 = vector.load %arg7[%c1576, %c0_89] : memref<1704x128xf32, #tpu.memory_space<vmem>>, vector<128x128xf32>
    %cst_90 = arith.constant dense<0.000000e+00> : vector<16x128xf32>
    %233 = tpu.matmul %209, %232, %cst_90 {dimension_numbers = #tpu.dot_dimension_numbers<[1], [0], [0], [1], [0, 0, 1, 1], [], []>} : vector<16x128xf32>, vector<128x128xf32>, vector<16x128xf32> -> vector<16x128xf32>
    %234 = vector.extract_strided_slice %0 {offsets = [10, 0], sizes = [1, 128], strides = [1, 1]} : vector<16x128xf32> to vector<1x128xf32>
    %235 = vector.broadcast %234 : vector<1x128xf32> to vector<16x128xf32>
    %236 = arith.addf %233, %235 : vector<16x128xf32>
    %c0_91 = arith.constant 0 : index
    %c0_92 = arith.constant 0 : index
    %237 = vector.load %arg9[%c0_91, %c0_92] : memref<40x128xf32, #tpu.memory_space<vmem>>, vector<16x128xf32>
    tpu.vector_store %arg9[%c0_91, %c0_92], %236 {strides = array<i32>} : memref<40x128xf32, #tpu.memory_space<vmem>>, vector<16x128xf32>,
    %c16_93 = arith.constant 16 : index
    %c0_94 = arith.constant 0 : index
    %238 = vector.load %arg9[%c16_93, %c0_94] : memref<40x128xf32, #tpu.memory_space<vmem>>, vector<24x128xf32>
    tpu.vector_store %arg9[%c16_93, %c0_94], %231 {strides = array<i32>} : memref<40x128xf32, #tpu.memory_space<vmem>>, vector<24x128xf32>,
    return
  }
  func.func @transform_0(%arg0: i32) -> (i32, i32) {
    %c0_i32 = arith.constant 0 : i32
    %c0_i32_0 = arith.constant 0 : i32
    %c0_i32_1 = arith.constant 0 : i32
    return %c0_i32, %c0_i32_0 : i32, i32
  }
  func.func @transform_1(%arg0: i32) -> (i32, i32) {
    %c0_i32 = arith.constant 0 : i32
    %c0_i32_0 = arith.constant 0 : i32
    %c0_i32_1 = arith.constant 0 : i32
    return %c0_i32, %c0_i32_0 : i32, i32
  }
  func.func @transform_2(%arg0: i32) -> (i32, i32) {
    %c0_i32 = arith.constant 0 : i32
    %c0_i32_0 = arith.constant 0 : i32
    %c0_i32_1 = arith.constant 0 : i32
    return %c0_i32, %c0_i32_0 : i32, i32
  }
  func.func @transform_3(%arg0: i32) -> (i32, i32) {
    %c0_i32 = arith.constant 0 : i32
    %c0_i32_0 = arith.constant 0 : i32
    %c0_i32_1 = arith.constant 0 : i32
    return %c0_i32, %c0_i32_0 : i32, i32
  }
  func.func @transform_4(%arg0: i32) -> (i32, i32) {
    %c0_i32 = arith.constant 0 : i32
    %c0_i32_0 = arith.constant 0 : i32
    %c0_i32_1 = arith.constant 0 : i32
    return %c0_i32, %c0_i32_0 : i32, i32
  }
  func.func @transform_5(%arg0: i32) -> (i32, i32) {
    %c0_i32 = arith.constant 0 : i32
    %c0_i32_0 = arith.constant 0 : i32
    %c0_i32_1 = arith.constant 0 : i32
    return %c0_i32, %c0_i32_0 : i32, i32
  }
  func.func @transform_6(%arg0: i32) -> (i32, i32) {
    %c0_i32 = arith.constant 0 : i32
    %c0_i32_0 = arith.constant 0 : i32
    %c0_i32_1 = arith.constant 0 : i32
    return %c0_i32, %c0_i32_0 : i32, i32
  }
  func.func @transform_7(%arg0: i32) -> (i32, i32) {
    %c0_i32 = arith.constant 0 : i32
    %c0_i32_0 = arith.constant 0 : i32
    %c0_i32_1 = arith.constant 0 : i32
    return %c0_i32, %c0_i32_0 : i32, i32
  }
  func.func @transform_8(%arg0: i32) -> (i32, i32) {
    %c0_i32 = arith.constant 0 : i32
    %c0_i32_0 = arith.constant 0 : i32
    %c0_i32_1 = arith.constant 0 : i32
    return %c0_i32, %c0_i32_0 : i32, i32
  }
}

</mosaic_0001>

<llo_original>
// kernel: hetero_gnn_forward.1
$region0: #{hetero_gnn_forward.1}
  #allocation0 [shape = 'u32[]', space=smem, size = 0x4, offset = 0x4, fixed_abs, tag = 'smem constant byte address 0x4 - core index']
  #allocation1 [shape = 'u32[72,128]{1,0:T(1,128)}', space=vmem, size = 0x9000, scoped, tag = 'internal scratch']
  %s0 = inlined_call_operand.vmem [shape: f32[16,24], index: 0, kind: input, shape index: {}]
  %s1 = inlined_call_operand.vmem [shape: f32[24,16], index: 1, kind: input, shape index: {}]
  %s2 = inlined_call_operand.vmem [shape: f32[64,896], index: 2, kind: input, shape index: {}]
  %s3 = inlined_call_operand.vmem [shape: f32[128,16], index: 3, kind: input, shape index: {}]
  %s4 = inlined_call_operand.vmem [shape: f32[128,24], index: 4, kind: input, shape index: {}]
  %s5 = inlined_call_operand.vmem [shape: f32[40,128], index: 5, kind: input, shape index: {}]
  %s6 = inlined_call_operand.vmem [shape: f32[1704,128], index: 6, kind: input, shape index: {}]
  %s7 = inlined_call_operand.vmem [shape: f32[16,128], index: 7, kind: input, shape index: {}]
  %s8 = inlined_call_operand.vmem [shape: f32[40,128], index: 8, kind: output, shape index: {}]
  %s9 = sld [smem:[#allocation0]]
  $region42: #{hetero_gnn_forward.1} parent=0
    _
  %s11 = ssub.s32 1, %s9
  %s12 = scalar_select 0, %s11, %s9
  // Predicated region
  $region2: #{hetero_gnn_forward.1} parent=0 // pred_check
    _
  $region3: #{hetero_gnn_forward.1} parent=0 // pred_check_branch
    %14 = sbr.rel (0) target = $region5
  $region4: #{hetero_gnn_forward.1} parent=0 // pred_region
    _
  $region5: #{hetero_gnn_forward.1} parent=0 // pred_fallthru
    _
  // Predicated region
  $region6: #{hetero_gnn_forward.1} parent=0 // pred_check
    _
  $region7: #{hetero_gnn_forward.1} parent=0 // pred_check_branch
    %16 = sbr.rel (0) target = $region9
  $region8: #{hetero_gnn_forward.1} parent=0 // pred_region
    _
  $region9: #{hetero_gnn_forward.1} parent=0 // pred_fallthru
    _
  // Predicated region
  $region10: #{hetero_gnn_forward.1} parent=0 // pred_check
    _
  $region11: #{hetero_gnn_forward.1} parent=0 // pred_check_branch
    %18 = sbr.rel (0) target = $region13
  $region12: #{hetero_gnn_forward.1} parent=0 // pred_region
    _
  $region13: #{hetero_gnn_forward.1} parent=0 // pred_fallthru
    _
  // Predicated region
  $region14: #{hetero_gnn_forward.1} parent=0 // pred_check
    _
  $region15: #{hetero_gnn_forward.1} parent=0 // pred_check_branch
    %20 = sbr.rel (0) target = $region17
  $region16: #{hetero_gnn_forward.1} parent=0 // pred_region
    _
  $region17: #{hetero_gnn_forward.1} parent=0 // pred_fallthru
    _
  // Predicated region
  $region18: #{hetero_gnn_forward.1} parent=0 // pred_check
    _
  $region19: #{hetero_gnn_forward.1} parent=0 // pred_check_branch
    %22 = sbr.rel (0) target = $region21
  $region20: #{hetero_gnn_forward.1} parent=0 // pred_region
    _
  $region21: #{hetero_gnn_forward.1} parent=0 // pred_fallthru
    _
  // Predicated region
  $region22: #{hetero_gnn_forward.1} parent=0 // pred_check
    _
  $region23: #{hetero_gnn_forward.1} parent=0 // pred_check_branch
    %24 = sbr.rel (0) target = $region25
  $region24: #{hetero_gnn_forward.1} parent=0 // pred_region
    _
  $region25: #{hetero_gnn_forward.1} parent=0 // pred_fallthru
    _
  // Predicated region
  $region26: #{hetero_gnn_forward.1} parent=0 // pred_check
    _
  $region27: #{hetero_gnn_forward.1} parent=0 // pred_check_branch
    %26 = sbr.rel (0) target = $region29
  $region28: #{hetero_gnn_forward.1} parent=0 // pred_region
    _
  $region29: #{hetero_gnn_forward.1} parent=0 // pred_fallthru
    _
  // Predicated region
  $region30: #{hetero_gnn_forward.1} parent=0 // pred_check
    _
  $region31: #{hetero_gnn_forward.1} parent=0 // pred_check_branch
    %28 = sbr.rel (0) target = $region33
  $region32: #{hetero_gnn_forward.1} parent=0 // pred_region
    _
  $region33: #{hetero_gnn_forward.1} parent=0 // pred_fallthru
    _
  %v29 = vld [vmem:[%s7] sm:$0xff]
  %v30 = vld [vmem:[%s7 + $0x8] sm:$0xff]
  %v31 = vld [vmem:[%s0] sm:$0xff]
  %v32 = vld [vmem:[%s0 + $0x8] sm:$0xff]
  %v33 = vld [vmem:[%s6 + $0x380] sm:$0xff]
  %v34 = vld [vmem:[%s6 + $0x388] sm:$0xff]
  %v35 = vld [vmem:[%s6 + $0x390] sm:$0xff]
  %vm36 = vcmask 195584
  %v38 = vsel %vm36, %v31, 0
  %v41 = vsel %vm36, %v32, 0
  %43 = vmatpush.msra.mxu0 0.0
  %44 = vmatpush.msra.mxu0 0.0
  %45 = vmatpush.msra.mxu0 0.0
  %46 = vmatpush.msra.mxu0 0.0
  %47 = vmatpush.msra.mxu0 0.0
  %48 = vmatpush.msra.mxu0 0.0
  %49 = vmatpush.msra.mxu0 0.0
  %50 = vmatpush.msra.mxu0 0.0
  %51 = vmatpush.msra.mxu0 0.0
  %52 = vmatpush.msra.mxu0 0.0
  %53 = vmatpush.msra.mxu0 0.0
  %54 = vmatpush.msra.mxu0 0.0
  %55 = vmatpush.msra.mxu0 0.0
  %56 = vmatpush.msra.mxu0 %v35
  %57 = vmatpush.msra.mxu0 %v34
  %58 = vmatpush.msra.mxu0 %v33
  %59 = vmatmul.f32.gmra.mxu0 %v38
  %v60 = vpop.f32.mrf.mxu0
  %v61 = vadd.f32 0.0, %v60
  %62 = vmatmul.f32.gmra.mxu0 %v41
  %v63 = vpop.f32.mrf.mxu0
  %v64 = vadd.f32 0.0, %v63
  %65 = vdwg.mxu0
  %v66 = vld [vmem:[%s1] sm:$0xff]
  %v67 = vld [vmem:[%s1 + $0x8] sm:$0xff]
  %v68 = vld [vmem:[%s1 + $0x10] sm:$0xff]
  %v69 = vld [vmem:[%s6 + $0x398] sm:$0xff]
  %v70 = vld [vmem:[%s6 + $0x3a0] sm:$0xff]
  %vm71 = vcmask 130048
  %v73 = vsel %vm71, %v66, 0
  %v76 = vsel %vm71, %v67, 0
  %v79 = vsel %vm71, %v68, 0
  %81 = vmatpush.msra.mxu0 0.0
  %82 = vmatpush.msra.mxu0 0.0
  %83 = vmatpush.msra.mxu0 0.0
  %84 = vmatpush.msra.mxu0 0.0
  %85 = vmatpush.msra.mxu0 0.0
  %86 = vmatpush.msra.mxu0 0.0
  %87 = vmatpush.msra.mxu0 0.0
  %88 = vmatpush.msra.mxu0 0.0
  %89 = vmatpush.msra.mxu0 0.0
  %90 = vmatpush.msra.mxu0 0.0
  %91 = vmatpush.msra.mxu0 0.0
  %92 = vmatpush.msra.mxu0 0.0
  %93 = vmatpush.msra.mxu0 0.0
  %94 = vmatpush.msra.mxu0 0.0
  %95 = vmatpush.msra.mxu0 %v70
  %96 = vmatpush.msra.mxu0 %v69
  %97 = vmatmul.f32.gmra.mxu0 %v73
  %v98 = vpop.f32.mrf.mxu0
  %v99 = vadd.f32 0.0, %v98
  %100 = vmatmul.f32.gmra.mxu0 %v76
  %v101 = vpop.f32.mrf.mxu0
  %v102 = vadd.f32 0.0, %v101
  %103 = vmatmul.f32.gmra.mxu0 %v79
  %v104 = vpop.f32.mrf.mxu0
  %v105 = vadd.f32 0.0, %v104
  %106 = vdwg.mxu0
  %v107 = vld [vmem:[%s2] sm:$0xff]
  %v108 = vld [vmem:[%s2 + $0x8] sm:$0xff]
  %v109 = vld [vmem:[%s2 + $0x10] sm:$0xff]
  %v110 = vld [vmem:[%s2 + $0x18] sm:$0xff]
  %v111 = vld [vmem:[%s2 + $0x20] sm:$0xff]
  %v112 = vld [vmem:[%s2 + $0x28] sm:$0xff]
  %v113 = vld [vmem:[%s2 + $0x30] sm:$0xff]
  %v114 = vld [vmem:[%s2 + $0x38] sm:$0xff]
  %v115 = vld [vmem:[%s2 + $0x40] sm:$0xff]
  %v116 = vld [vmem:[%s2 + $0x48] sm:$0xff]
  %v117 = vld [vmem:[%s2 + $0x50] sm:$0xff]
  %v118 = vld [vmem:[%s2 + $0x58] sm:$0xff]
  %v119 = vld [vmem:[%s2 + $0x60] sm:$0xff]
  %v120 = vld [vmem:[%s2 + $0x68] sm:$0xff]
  %v121 = vld [vmem:[%s2 + $0x70] sm:$0xff]
  %v122 = vld [vmem:[%s2 + $0x78] sm:$0xff]
  %v123 = vld [vmem:[%s2 + $0x80] sm:$0xff]
  %v124 = vld [vmem:[%s2 + $0x88] sm:$0xff]
  %v125 = vld [vmem:[%s2 + $0x90] sm:$0xff]
  %v126 = vld [vmem:[%s2 + $0x98] sm:$0xff]
  %v127 = vld [vmem:[%s2 + $0xa0] sm:$0xff]
  %v128 = vld [vmem:[%s2 + $0xa8] sm:$0xff]
  %v129 = vld [vmem:[%s2 + $0xb0] sm:$0xff]
  %v130 = vld [vmem:[%s2 + $0xb8] sm:$0xff]
  %v131 = vld [vmem:[%s2 + $0xc0] sm:$0xff]
  %v132 = vld [vmem:[%s2 + $0xc8] sm:$0xff]
  %v133 = vld [vmem:[%s2 + $0xd0] sm:$0xff]
  %v134 = vld [vmem:[%s2 + $0xd8] sm:$0xff]
  %v135 = vld [vmem:[%s2 + $0xe0] sm:$0xff]
  %v136 = vld [vmem:[%s2 + $0xe8] sm:$0xff]
  %v137 = vld [vmem:[%s2 + $0xf0] sm:$0xff]
  %v138 = vld [vmem:[%s2 + $0xf8] sm:$0xff]
  %v139 = vld [vmem:[%s2 + $0x100] sm:$0xff]
  %v140 = vld [vmem:[%s2 + $0x108] sm:$0xff]
  %v141 = vld [vmem:[%s2 + $0x110] sm:$0xff]
  %v142 = vld [vmem:[%s2 + $0x118] sm:$0xff]
  %v143 = vld [vmem:[%s2 + $0x120] sm:$0xff]
  %v144 = vld [vmem:[%s2 + $0x128] sm:$0xff]
  %v145 = vld [vmem:[%s2 + $0x130] sm:$0xff]
  %v146 = vld [vmem:[%s2 + $0x138] sm:$0xff]
  %v147 = vld [vmem:[%s2 + $0x140] sm:$0xff]
  %v148 = vld [vmem:[%s2 + $0x148] sm:$0xff]
  %v149 = vld [vmem:[%s2 + $0x150] sm:$0xff]
  %v150 = vld [vmem:[%s2 + $0x158] sm:$0xff]
  %v151 = vld [vmem:[%s2 + $0x160] sm:$0xff]
  %v152 = vld [vmem:[%s2 + $0x168] sm:$0xff]
  %v153 = vld [vmem:[%s2 + $0x170] sm:$0xff]
  %v154 = vld [vmem:[%s2 + $0x178] sm:$0xff]
  %v155 = vld [vmem:[%s2 + $0x180] sm:$0xff]
  %v156 = vld [vmem:[%s2 + $0x188] sm:$0xff]
  %v157 = vld [vmem:[%s2 + $0x190] sm:$0xff]
  %v158 = vld [vmem:[%s2 + $0x198] sm:$0xff]
  %v159 = vld [vmem:[%s2 + $0x1a0] sm:$0xff]
  %v160 = vld [vmem:[%s2 + $0x1a8] sm:$0xff]
  %v161 = vld [vmem:[%s2 + $0x1b0] sm:$0xff]
  %v162 = vld [vmem:[%s2 + $0x1b8] sm:$0xff]
  %v163 = vld [vmem:[%s6] sm:$0xff]
  %v164 = vld [vmem:[%s6 + $0x8] sm:$0xff]
  %v165 = vld [vmem:[%s6 + $0x10] sm:$0xff]
  %v166 = vld [vmem:[%s6 + $0x18] sm:$0xff]
  %v167 = vld [vmem:[%s6 + $0x20] sm:$0xff]
  %v168 = vld [vmem:[%s6 + $0x28] sm:$0xff]
  %v169 = vld [vmem:[%s6 + $0x30] sm:$0xff]
  %v170 = vld [vmem:[%s6 + $0x38] sm:$0xff]
  %v171 = vld [vmem:[%s6 + $0x40] sm:$0xff]
  %v172 = vld [vmem:[%s6 + $0x48] sm:$0xff]
  %v173 = vld [vmem:[%s6 + $0x50] sm:$0xff]
  %v174 = vld [vmem:[%s6 + $0x58] sm:$0xff]
  %v175 = vld [vmem:[%s6 + $0x60] sm:$0xff]
  %v176 = vld [vmem:[%s6 + $0x68] sm:$0xff]
  %v177 = vld [vmem:[%s6 + $0x70] sm:$0xff]
  %v178 = vld [vmem:[%s6 + $0x78] sm:$0xff]
  %v179 = vld [vmem:[%s6 + $0x80] sm:$0xff]
  %v180 = vld [vmem:[%s6 + $0x88] sm:$0xff]
  %v181 = vld [vmem:[%s6 + $0x90] sm:$0xff]
  %v182 = vld [vmem:[%s6 + $0x98] sm:$0xff]
  %v183 = vld [vmem:[%s6 + $0xa0] sm:$0xff]
  %v184 = vld [vmem:[%s6 + $0xa8] sm:$0xff]
  %v185 = vld [vmem:[%s6 + $0xb0] sm:$0xff]
  %v186 = vld [vmem:[%s6 + $0xb8] sm:$0xff]
  %v187 = vld [vmem:[%s6 + $0xc0] sm:$0xff]
  %v188 = vld [vmem:[%s6 + $0xc8] sm:$0xff]
  %v189 = vld [vmem:[%s6 + $0xd0] sm:$0xff]
  %v190 = vld [vmem:[%s6 + $0xd8] sm:$0xff]
  %v191 = vld [vmem:[%s6 + $0xe0] sm:$0xff]
  %v192 = vld [vmem:[%s6 + $0xe8] sm:$0xff]
  %v193 = vld [vmem:[%s6 + $0xf0] sm:$0xff]
  %v194 = vld [vmem:[%s6 + $0xf8] sm:$0xff]
  %v195 = vld [vmem:[%s6 + $0x100] sm:$0xff]
  %v196 = vld [vmem:[%s6 + $0x108] sm:$0xff]
  %v197 = vld [vmem:[%s6 + $0x110] sm:$0xff]
  %v198 = vld [vmem:[%s6 + $0x118] sm:$0xff]
  %v199 = vld [vmem:[%s6 + $0x120] sm:$0xff]
  %v200 = vld [vmem:[%s6 + $0x128] sm:$0xff]
  %v201 = vld [vmem:[%s6 + $0x130] sm:$0xff]
  %v202 = vld [vmem:[%s6 + $0x138] sm:$0xff]
  %v203 = vld [vmem:[%s6 + $0x140] sm:$0xff]
  %v204 = vld [vmem:[%s6 + $0x148] sm:$0xff]
  %v205 = vld [vmem:[%s6 + $0x150] sm:$0xff]
  %v206 = vld [vmem:[%s6 + $0x158] sm:$0xff]
  %v207 = vld [vmem:[%s6 + $0x160] sm:$0xff]
  %v208 = vld [vmem:[%s6 + $0x168] sm:$0xff]
  %v209 = vld [vmem:[%s6 + $0x170] sm:$0xff]
  %v210 = vld [vmem:[%s6 + $0x178] sm:$0xff]
  %v211 = vld [vmem:[%s6 + $0x180] sm:$0xff]
  %v212 = vld [vmem:[%s6 + $0x188] sm:$0xff]
  %v213 = vld [vmem:[%s6 + $0x190] sm:$0xff]
  %v214 = vld [vmem:[%s6 + $0x198] sm:$0xff]
  %v215 = vld [vmem:[%s6 + $0x1a0] sm:$0xff]
  %v216 = vld [vmem:[%s6 + $0x1a8] sm:$0xff]
  %v217 = vld [vmem:[%s6 + $0x1b0] sm:$0xff]
  %v218 = vld [vmem:[%s6 + $0x1b8] sm:$0xff]
  %v219 = vld [vmem:[%s6 + $0x1c0] sm:$0xff]
  %v220 = vld [vmem:[%s6 + $0x1c8] sm:$0xff]
  %v221 = vld [vmem:[%s6 + $0x1d0] sm:$0xff]
  %v222 = vld [vmem:[%s6 + $0x1d8] sm:$0xff]
  %v223 = vld [vmem:[%s6 + $0x1e0] sm:$0xff]
  %v224 = vld [vmem:[%s6 + $0x1e8] sm:$0xff]
  %v225 = vld [vmem:[%s6 + $0x1f0] sm:$0xff]
  %v226 = vld [vmem:[%s6 + $0x1f8] sm:$0xff]
  %v227 = vld [vmem:[%s6 + $0x200] sm:$0xff]
  %v228 = vld [vmem:[%s6 + $0x208] sm:$0xff]
  %v229 = vld [vmem:[%s6 + $0x210] sm:$0xff]
  %v230 = vld [vmem:[%s6 + $0x218] sm:$0xff]
  %v231 = vld [vmem:[%s6 + $0x220] sm:$0xff]
  %v232 = vld [vmem:[%s6 + $0x228] sm:$0xff]
  %v233 = vld [vmem:[%s6 + $0x230] sm:$0xff]
  %v234 = vld [vmem:[%s6 + $0x238] sm:$0xff]
  %v235 = vld [vmem:[%s6 + $0x240] sm:$0xff]
  %v236 = vld [vmem:[%s6 + $0x248] sm:$0xff]
  %v237 = vld [vmem:[%s6 + $0x250] sm:$0xff]
  %v238 = vld [vmem:[%s6 + $0x258] sm:$0xff]
  %v239 = vld [vmem:[%s6 + $0x260] sm:$0xff]
  %v240 = vld [vmem:[%s6 + $0x268] sm:$0xff]
  %v241 = vld [vmem:[%s6 + $0x270] sm:$0xff]
  %v242 = vld [vmem:[%s6 + $0x278] sm:$0xff]
  %v243 = vld [vmem:[%s6 + $0x280] sm:$0xff]
  %v244 = vld [vmem:[%s6 + $0x288] sm:$0xff]
  %v245 = vld [vmem:[%s6 + $0x290] sm:$0xff]
  %v246 = vld [vmem:[%s6 + $0x298] sm:$0xff]
  %v247 = vld [vmem:[%s6 + $0x2a0] sm:$0xff]
  %v248 = vld [vmem:[%s6 + $0x2a8] sm:$0xff]
  %v249 = vld [vmem:[%s6 + $0x2b0] sm:$0xff]
  %v250 = vld [vmem:[%s6 + $0x2b8] sm:$0xff]
  %v251 = vld [vmem:[%s6 + $0x2c0] sm:$0xff]
  %v252 = vld [vmem:[%s6 + $0x2c8] sm:$0xff]
  %v253 = vld [vmem:[%s6 + $0x2d0] sm:$0xff]
  %v254 = vld [vmem:[%s6 + $0x2d8] sm:$0xff]
  %v255 = vld [vmem:[%s6 + $0x2e0] sm:$0xff]
  %v256 = vld [vmem:[%s6 + $0x2e8] sm:$0xff]
  %v257 = vld [vmem:[%s6 + $0x2f0] sm:$0xff]
  %v258 = vld [vmem:[%s6 + $0x2f8] sm:$0xff]
  %v259 = vld [vmem:[%s6 + $0x300] sm:$0xff]
  %v260 = vld [vmem:[%s6 + $0x308] sm:$0xff]
  %v261 = vld [vmem:[%s6 + $0x310] sm:$0xff]
  %v262 = vld [vmem:[%s6 + $0x318] sm:$0xff]
  %v263 = vld [vmem:[%s6 + $0x320] sm:$0xff]
  %v264 = vld [vmem:[%s6 + $0x328] sm:$0xff]
  %v265 = vld [vmem:[%s6 + $0x330] sm:$0xff]
  %v266 = vld [vmem:[%s6 + $0x338] sm:$0xff]
  %v267 = vld [vmem:[%s6 + $0x340] sm:$0xff]
  %v268 = vld [vmem:[%s6 + $0x348] sm:$0xff]
  %v269 = vld [vmem:[%s6 + $0x350] sm:$0xff]
  %v270 = vld [vmem:[%s6 + $0x358] sm:$0xff]
  %v271 = vld [vmem:[%s6 + $0x360] sm:$0xff]
  %v272 = vld [vmem:[%s6 + $0x368] sm:$0xff]
  %v273 = vld [vmem:[%s6 + $0x370] sm:$0xff]
  %v274 = vld [vmem:[%s6 + $0x378] sm:$0xff]
  %275 = vmatpush.msra.mxu0 %v178
  %276 = vmatpush.msra.mxu0 %v177
  %277 = vmatpush.msra.mxu0 %v176
  %278 = vmatpush.msra.mxu0 %v175
  %279 = vmatpush.msra.mxu0 %v174
  %280 = vmatpush.msra.mxu0 %v173
  %281 = vmatpush.msra.mxu0 %v172
  %282 = vmatpush.msra.mxu0 %v171
  %283 = vmatpush.msra.mxu0 %v170
  %284 = vmatpush.msra.mxu0 %v169
  %285 = vmatpush.msra.mxu0 %v168
  %286 = vmatpush.msra.mxu0 %v167
  %287 = vmatpush.msra.mxu0 %v166
  %288 = vmatpush.msra.mxu0 %v165
  %289 = vmatpush.msra.mxu0 %v164
  %290 = vmatpush.msra.mxu0 %v163
  %291 = vmatmul.f32.gmra.mxu0 %v107
  %v292 = vpop.f32.mrf.mxu0
  %v293 = vadd.f32 0.0, %v292
  %294 = vmatmul.f32.gmra.mxu0 %v114
  %v295 = vpop.f32.mrf.mxu0
  %v296 = vadd.f32 0.0, %v295
  %297 = vmatmul.f32.gmra.mxu0 %v121
  %v298 = vpop.f32.mrf.mxu0
  %v299 = vadd.f32 0.0, %v298
  %300 = vmatmul.f32.gmra.mxu0 %v128
  %v301 = vpop.f32.mrf.mxu0
  %v302 = vadd.f32 0.0, %v301
  %303 = vmatmul.f32.gmra.mxu0 %v135
  %v304 = vpop.f32.mrf.mxu0
  %v305 = vadd.f32 0.0, %v304
  %306 = vmatmul.f32.gmra.mxu0 %v142
  %v307 = vpop.f32.mrf.mxu0
  %v308 = vadd.f32 0.0, %v307
  %309 = vmatmul.f32.gmra.mxu0 %v149
  %v310 = vpop.f32.mrf.mxu0
  %v311 = vadd.f32 0.0, %v310
  %312 = vmatmul.f32.gmra.mxu0 %v156
  %v313 = vpop.f32.mrf.mxu0
  %v314 = vadd.f32 0.0, %v313
  %315 = vdwg.mxu0
  %316 = vmatpush.msra.mxu0 %v194
  %317 = vmatpush.msra.mxu0 %v193
  %318 = vmatpush.msra.mxu0 %v192
  %319 = vmatpush.msra.mxu0 %v191
  %320 = vmatpush.msra.mxu0 %v190
  %321 = vmatpush.msra.mxu0 %v189
  %322 = vmatpush.msra.mxu0 %v188
  %323 = vmatpush.msra.mxu0 %v187
  %324 = vmatpush.msra.mxu0 %v186
  %325 = vmatpush.msra.mxu0 %v185
  %326 = vmatpush.msra.mxu0 %v184
  %327 = vmatpush.msra.mxu0 %v183
  %328 = vmatpush.msra.mxu0 %v182
  %329 = vmatpush.msra.mxu0 %v181
  %330 = vmatpush.msra.mxu0 %v180
  %331 = vmatpush.msra.mxu0 %v179
  %332 = vmatmul.f32.gmra.mxu0 %v108
  %v333 = vpop.f32.mrf.mxu0
  %v334 = vadd.f32 %v293, %v333
  %335 = vmatmul.f32.gmra.mxu0 %v115
  %v336 = vpop.f32.mrf.mxu0
  %v337 = vadd.f32 %v296, %v336
  %338 = vmatmul.f32.gmra.mxu0 %v122
  %v339 = vpop.f32.mrf.mxu0
  %v340 = vadd.f32 %v299, %v339
  %341 = vmatmul.f32.gmra.mxu0 %v129
  %v342 = vpop.f32.mrf.mxu0
  %v343 = vadd.f32 %v302, %v342
  %344 = vmatmul.f32.gmra.mxu0 %v136
  %v345 = vpop.f32.mrf.mxu0
  %v346 = vadd.f32 %v305, %v345
  %347 = vmatmul.f32.gmra.mxu0 %v143
  %v348 = vpop.f32.mrf.mxu0
  %v349 = vadd.f32 %v308, %v348
  %350 = vmatmul.f32.gmra.mxu0 %v150
  %v351 = vpop.f32.mrf.mxu0
  %v352 = vadd.f32 %v311, %v351
  %353 = vmatmul.f32.gmra.mxu0 %v157
  %v354 = vpop.f32.mrf.mxu0
  %v355 = vadd.f32 %v314, %v354
  %356 = vdwg.mxu0
  %357 = vmatpush.msra.mxu0 %v210
  %358 = vmatpush.msra.mxu0 %v209
  %359 = vmatpush.msra.mxu0 %v208
  %360 = vmatpush.msra.mxu0 %v207
  %361 = vmatpush.msra.mxu0 %v206
  %362 = vmatpush.msra.mxu0 %v205
  %363 = vmatpush.msra.mxu0 %v204
  %364 = vmatpush.msra.mxu0 %v203
  %365 = vmatpush.msra.mxu0 %v202
  %366 = vmatpush.msra.mxu0 %v201
  %367 = vmatpush.msra.mxu0 %v200
  %368 = vmatpush.msra.mxu0 %v199
  %369 = vmatpush.msra.mxu0 %v198
  %370 = vmatpush.msra.mxu0 %v197
  %371 = vmatpush.msra.mxu0 %v196
  %372 = vmatpush.msra.mxu0 %v195
  %373 = vmatmul.f32.gmra.mxu0 %v109
  %v374 = vpop.f32.mrf.mxu0
  %v375 = vadd.f32 %v334, %v374
  %376 = vmatmul.f32.gmra.mxu0 %v116
  %v377 = vpop.f32.mrf.mxu0
  %v378 = vadd.f32 %v337, %v377
  %379 = vmatmul.f32.gmra.mxu0 %v123
  %v380 = vpop.f32.mrf.mxu0
  %v381 = vadd.f32 %v340, %v380
  %382 = vmatmul.f32.gmra.mxu0 %v130
  %v383 = vpop.f32.mrf.mxu0
  %v384 = vadd.f32 %v343, %v383
  %385 = vmatmul.f32.gmra.mxu0 %v137
  %v386 = vpop.f32.mrf.mxu0
  %v387 = vadd.f32 %v346, %v386
  %388 = vmatmul.f32.gmra.mxu0 %v144
  %v389 = vpop.f32.mrf.mxu0
  %v390 = vadd.f32 %v349, %v389
  %391 = vmatmul.f32.gmra.mxu0 %v151
  %v392 = vpop.f32.mrf.mxu0
  %v393 = vadd.f32 %v352, %v392
  %394 = vmatmul.f32.gmra.mxu0 %v158
  %v395 = vpop.f32.mrf.mxu0
  %v396 = vadd.f32 %v355, %v395
  %397 = vdwg.mxu0
  %398 = vmatpush.msra.mxu0 %v226
  %399 = vmatpush.msra.mxu0 %v225
  %400 = vmatpush.msra.mxu0 %v224
  %401 = vmatpush.msra.mxu0 %v223
  %402 = vmatpush.msra.mxu0 %v222
  %403 = vmatpush.msra.mxu0 %v221
  %404 = vmatpush.msra.mxu0 %v220
  %405 = vmatpush.msra.mxu0 %v219
  %406 = vmatpush.msra.mxu0 %v218
  %407 = vmatpush.msra.mxu0 %v217
  %408 = vmatpush.msra.mxu0 %v216
  %409 = vmatpush.msra.mxu0 %v215
  %410 = vmatpush.msra.mxu0 %v214
  %411 = vmatpush.msra.mxu0 %v213
  %412 = vmatpush.msra.mxu0 %v212
  %413 = vmatpush.msra.mxu0 %v211
  %414 = vmatmul.f32.gmra.mxu0 %v110
  %v415 = vpop.f32.mrf.mxu0
  %v416 = vadd.f32 %v375, %v415
  %417 = vmatmul.f32.gmra.mxu0 %v117
  %v418 = vpop.f32.mrf.mxu0
  %v419 = vadd.f32 %v378, %v418
  %420 = vmatmul.f32.gmra.mxu0 %v124
  %v421 = vpop.f32.mrf.mxu0
  %v422 = vadd.f32 %v381, %v421
  %423 = vmatmul.f32.gmra.mxu0 %v131
  %v424 = vpop.f32.mrf.mxu0
  %v425 = vadd.f32 %v384, %v424
  %426 = vmatmul.f32.gmra.mxu0 %v138
  %v427 = vpop.f32.mrf.mxu0
  %v428 = vadd.f32 %v387, %v427
  %429 = vmatmul.f32.gmra.mxu0 %v145
  %v430 = vpop.f32.mrf.mxu0
  %v431 = vadd.f32 %v390, %v430
  %432 = vmatmul.f32.gmra.mxu0 %v152
  %v433 = vpop.f32.mrf.mxu0
  %v434 = vadd.f32 %v393, %v433
  %435 = vmatmul.f32.gmra.mxu0 %v159
  %v436 = vpop.f32.mrf.mxu0
  %v437 = vadd.f32 %v396, %v436
  %438 = vdwg.mxu0
  %439 = vmatpush.msra.mxu0 %v242
  %440 = vmatpush.msra.mxu0 %v241
  %441 = vmatpush.msra.mxu0 %v240
  %442 = vmatpush.msra.mxu0 %v239
  %443 = vmatpush.msra.mxu0 %v238
  %444 = vmatpush.msra.mxu0 %v237
  %445 = vmatpush.msra.mxu0 %v236
  %446 = vmatpush.msra.mxu0 %v235
  %447 = vmatpush.msra.mxu0 %v234
  %448 = vmatpush.msra.mxu0 %v233
  %449 = vmatpush.msra.mxu0 %v232
  %450 = vmatpush.msra.mxu0 %v231
  %451 = vmatpush.msra.mxu0 %v230
  %452 = vmatpush.msra.mxu0 %v229
  %453 = vmatpush.msra.mxu0 %v228
  %454 = vmatpush.msra.mxu0 %v227
  %455 = vmatmul.f32.gmra.mxu0 %v111
  %v456 = vpop.f32.mrf.mxu0
  %v457 = vadd.f32 %v416, %v456
  %458 = vmatmul.f32.gmra.mxu0 %v118
  %v459 = vpop.f32.mrf.mxu0
  %v460 = vadd.f32 %v419, %v459
  %461 = vmatmul.f32.gmra.mxu0 %v125
  %v462 = vpop.f32.mrf.mxu0
  %v463 = vadd.f32 %v422, %v462
  %464 = vmatmul.f32.gmra.mxu0 %v132
  %v465 = vpop.f32.mrf.mxu0
  %v466 = vadd.f32 %v425, %v465
  %467 = vmatmul.f32.gmra.mxu0 %v139
  %v468 = vpop.f32.mrf.mxu0
  %v469 = vadd.f32 %v428, %v468
  %470 = vmatmul.f32.gmra.mxu0 %v146
  %v471 = vpop.f32.mrf.mxu0
  %v472 = vadd.f32 %v431, %v471
  %473 = vmatmul.f32.gmra.mxu0 %v153
  %v474 = vpop.f32.mrf.mxu0
  %v475 = vadd.f32 %v434, %v474
  %476 = vmatmul.f32.gmra.mxu0 %v160
  %v477 = vpop.f32.mrf.mxu0
  %v478 = vadd.f32 %v437, %v477
  %479 = vdwg.mxu0
  %480 = vmatpush.msra.mxu0 %v258
  %481 = vmatpush.msra.mxu0 %v257
  %482 = vmatpush.msra.mxu0 %v256
  %483 = vmatpush.msra.mxu0 %v255
  %484 = vmatpush.msra.mxu0 %v254
  %485 = vmatpush.msra.mxu0 %v253
  %486 = vmatpush.msra.mxu0 %v252
  %487 = vmatpush.msra.mxu0 %v251
  %488 = vmatpush.msra.mxu0 %v250
  %489 = vmatpush.msra.mxu0 %v249
  %490 = vmatpush.msra.mxu0 %v248
  %491 = vmatpush.msra.mxu0 %v247
  %492 = vmatpush.msra.mxu0 %v246
  %493 = vmatpush.msra.mxu0 %v245
  %494 = vmatpush.msra.mxu0 %v244
  %495 = vmatpush.msra.mxu0 %v243
  %496 = vmatmul.f32.gmra.mxu0 %v112
  %v497 = vpop.f32.mrf.mxu0
  %v498 = vadd.f32 %v457, %v497
  %499 = vmatmul.f32.gmra.mxu0 %v119
  %v500 = vpop.f32.mrf.mxu0
  %v501 = vadd.f32 %v460, %v500
  %502 = vmatmul.f32.gmra.mxu0 %v126
  %v503 = vpop.f32.mrf.mxu0
  %v504 = vadd.f32 %v463, %v503
  %505 = vmatmul.f32.gmra.mxu0 %v133
  %v506 = vpop.f32.mrf.mxu0
  %v507 = vadd.f32 %v466, %v506
  %508 = vmatmul.f32.gmra.mxu0 %v140
  %v509 = vpop.f32.mrf.mxu0
  %v510 = vadd.f32 %v469, %v509
  %511 = vmatmul.f32.gmra.mxu0 %v147
  %v512 = vpop.f32.mrf.mxu0
  %v513 = vadd.f32 %v472, %v512
  %514 = vmatmul.f32.gmra.mxu0 %v154
  %v515 = vpop.f32.mrf.mxu0
  %v516 = vadd.f32 %v475, %v515
  %517 = vmatmul.f32.gmra.mxu0 %v161
  %v518 = vpop.f32.mrf.mxu0
  %v519 = vadd.f32 %v478, %v518
  %520 = vdwg.mxu0
  %521 = vmatpush.msra.mxu0 %v274
  %522 = vmatpush.msra.mxu0 %v273
  %523 = vmatpush.msra.mxu0 %v272
  %524 = vmatpush.msra.mxu0 %v271
  %525 = vmatpush.msra.mxu0 %v270
  %526 = vmatpush.msra.mxu0 %v269
  %527 = vmatpush.msra.mxu0 %v268
  %528 = vmatpush.msra.mxu0 %v267
  %529 = vmatpush.msra.mxu0 %v266
  %530 = vmatpush.msra.mxu0 %v265
  %531 = vmatpush.msra.mxu0 %v264
  %532 = vmatpush.msra.mxu0 %v263
  %533 = vmatpush.msra.mxu0 %v262
  %534 = vmatpush.msra.mxu0 %v261
  %535 = vmatpush.msra.mxu0 %v260
  %536 = vmatpush.msra.mxu0 %v259
  %537 = vmatmul.f32.gmra.mxu0 %v113
  %v538 = vpop.f32.mrf.mxu0
  %v539 = vadd.f32 %v498, %v538
  %540 = vmatmul.f32.gmra.mxu0 %v120
  %v541 = vpop.f32.mrf.mxu0
  %v542 = vadd.f32 %v501, %v541
  %543 = vmatmul.f32.gmra.mxu0 %v127
  %v544 = vpop.f32.mrf.mxu0
  %v545 = vadd.f32 %v504, %v544
  %546 = vmatmul.f32.gmra.mxu0 %v134
  %v547 = vpop.f32.mrf.mxu0
  %v548 = vadd.f32 %v507, %v547
  %549 = vmatmul.f32.gmra.mxu0 %v141
  %v550 = vpop.f32.mrf.mxu0
  %v551 = vadd.f32 %v510, %v550
  %552 = vmatmul.f32.gmra.mxu0 %v148
  %v553 = vpop.f32.mrf.mxu0
  %v554 = vadd.f32 %v513, %v553
  %555 = vmatmul.f32.gmra.mxu0 %v155
  %v556 = vpop.f32.mrf.mxu0
  %v557 = vadd.f32 %v516, %v556
  %558 = vmatmul.f32.gmra.mxu0 %v162
  %v559 = vpop.f32.mrf.mxu0
  %v560 = vadd.f32 %v519, %v559
  %561 = vdwg.mxu0
  %v562 = vld [vmem:[%s3] sm:$0xff]
  %v563 = vld [vmem:[%s3 + $0x8] sm:$0xff]
  %v564 = vld [vmem:[%s3 + $0x10] sm:$0xff]
  %v565 = vld [vmem:[%s3 + $0x18] sm:$0xff]
  %v566 = vld [vmem:[%s3 + $0x20] sm:$0xff]
  %v567 = vld [vmem:[%s3 + $0x28] sm:$0xff]
  %v568 = vld [vmem:[%s3 + $0x30] sm:$0xff]
  %v569 = vld [vmem:[%s3 + $0x38] sm:$0xff]
  %v571 = vsel %vm71, %v562, 0
  %v574 = vsel %vm71, %v563, 0
  %v577 = vsel %vm71, %v564, 0
  %v580 = vsel %vm71, %v565, 0
  %v583 = vsel %vm71, %v566, 0
  %v586 = vsel %vm71, %v567, 0
  %v589 = vsel %vm71, %v568, 0
  %v592 = vsel %vm71, %v569, 0
  %594 = vmatpush.msra.mxu0 0.0
  %595 = vmatpush.msra.mxu0 0.0
  %596 = vmatpush.msra.mxu0 0.0
  %597 = vmatpush.msra.mxu0 0.0
  %598 = vmatpush.msra.mxu0 0.0
  %599 = vmatpush.msra.mxu0 0.0
  %600 = vmatpush.msra.mxu0 0.0
  %601 = vmatpush.msra.mxu0 0.0
  %602 = vmatpush.msra.mxu0 0.0
  %603 = vmatpush.msra.mxu0 0.0
  %604 = vmatpush.msra.mxu0 0.0
  %605 = vmatpush.msra.mxu0 0.0
  %606 = vmatpush.msra.mxu0 0.0
  %607 = vmatpush.msra.mxu0 0.0
  %608 = vmatpush.msra.mxu0 %v64
  %609 = vmatpush.msra.mxu0 %v61
  %610 = vmatmul.f32.gmra.mxu0 %v571
  %v611 = vpop.f32.mrf.mxu0
  %v612 = vadd.f32 %v539, %v611
  %613 = vmatmul.f32.gmra.mxu0 %v574
  %v614 = vpop.f32.mrf.mxu0
  %v615 = vadd.f32 %v542, %v614
  %616 = vmatmul.f32.gmra.mxu0 %v577
  %v617 = vpop.f32.mrf.mxu0
  %v618 = vadd.f32 %v545, %v617
  %619 = vmatmul.f32.gmra.mxu0 %v580
  %v620 = vpop.f32.mrf.mxu0
  %v621 = vadd.f32 %v548, %v620
  %622 = vmatmul.f32.gmra.mxu0 %v583
  %v623 = vpop.f32.mrf.mxu0
  %v624 = vadd.f32 %v551, %v623
  %625 = vmatmul.f32.gmra.mxu0 %v586
  %v626 = vpop.f32.mrf.mxu0
  %v627 = vadd.f32 %v554, %v626
  %628 = vmatmul.f32.gmra.mxu0 %v589
  %v629 = vpop.f32.mrf.mxu0
  %v630 = vadd.f32 %v557, %v629
  %631 = vmatmul.f32.gmra.mxu0 %v592
  %v632 = vpop.f32.mrf.mxu0
  %v633 = vadd.f32 %v560, %v632
  %634 = vdwg.mxu0
  %v635 = vmax.f32 %v612, 0.0
  %v636 = vmax.f32 %v615, 0.0
  %v637 = vmax.f32 %v618, 0.0
  %v638 = vmax.f32 %v621, 0.0
  %v639 = vmax.f32 %v624, 0.0
  %v640 = vmax.f32 %v627, 0.0
  %v641 = vmax.f32 %v630, 0.0
  %v642 = vmax.f32 %v633, 0.0
  %v643 = vadd.f32 %v635, 1e-07
  %v644 = vadd.f32 %v636, 1e-07
  %v645 = vadd.f32 %v637, 1e-07
  %v646 = vadd.f32 %v638, 1e-07
  %v647 = vadd.f32 %v639, 1e-07
  %v648 = vadd.f32 %v640, 1e-07
  %v649 = vadd.f32 %v641, 1e-07
  %v650 = vadd.f32 %v642, 1e-07
  %v651 = vld [vmem:[%s3 + $0x40] sm:$0xff]
  %v652 = vld [vmem:[%s3 + $0x48] sm:$0xff]
  %v653 = vld [vmem:[%s3 + $0x50] sm:$0xff]
  %v654 = vld [vmem:[%s3 + $0x58] sm:$0xff]
  %v655 = vld [vmem:[%s3 + $0x60] sm:$0xff]
  %v656 = vld [vmem:[%s3 + $0x68] sm:$0xff]
  %v657 = vld [vmem:[%s3 + $0x70] sm:$0xff]
  %v658 = vld [vmem:[%s3 + $0x78] sm:$0xff]
  %661 = vrot.lane.b32.xlu0 %v61, 96
  %v662 = vpop.permute.xlu0 %661
  %663 = vrot.lane.b32.xlu0 %v64, 96
  %v664 = vpop.permute.xlu0 %663
  %675 = vrot.lane.b32.xlu0 %v539, 96
  %v676 = vpop.permute.xlu0 %675
  %677 = vrot.lane.b32.xlu0 %v542, 96
  %v678 = vpop.permute.xlu0 %677
  %679 = vrot.lane.b32.xlu0 %v545, 96
  %v680 = vpop.permute.xlu0 %679
  %681 = vrot.lane.b32.xlu0 %v548, 96
  %v682 = vpop.permute.xlu0 %681
  %683 = vrot.lane.b32.xlu0 %v551, 96
  %v684 = vpop.permute.xlu0 %683
  %685 = vrot.lane.b32.xlu0 %v554, 96
  %v686 = vpop.permute.xlu0 %685
  %687 = vrot.lane.b32.xlu0 %v557, 96
  %v688 = vpop.permute.xlu0 %687
  %689 = vrot.lane.b32.xlu0 %v560, 96
  %v690 = vpop.permute.xlu0 %689
  %v700 = vsel %vm71, %v651, 0
  %v703 = vsel %vm71, %v652, 0
  %v706 = vsel %vm71, %v653, 0
  %v709 = vsel %vm71, %v654, 0
  %v712 = vsel %vm71, %v655, 0
  %v715 = vsel %vm71, %v656, 0
  %v718 = vsel %vm71, %v657, 0
  %v721 = vsel %vm71, %v658, 0
  %723 = vmatpush.msra.mxu0 0.0
  %724 = vmatpush.msra.mxu0 0.0
  %725 = vmatpush.msra.mxu0 0.0
  %726 = vmatpush.msra.mxu0 0.0
  %727 = vmatpush.msra.mxu0 0.0
  %728 = vmatpush.msra.mxu0 0.0
  %729 = vmatpush.msra.mxu0 0.0
  %730 = vmatpush.msra.mxu0 0.0
  %731 = vmatpush.msra.mxu0 0.0
  %732 = vmatpush.msra.mxu0 0.0
  %733 = vmatpush.msra.mxu0 0.0
  %734 = vmatpush.msra.mxu0 0.0
  %735 = vmatpush.msra.mxu0 0.0
  %736 = vmatpush.msra.mxu0 0.0
  %737 = vmatpush.msra.mxu0 %v664
  %738 = vmatpush.msra.mxu0 %v662
  %739 = vmatmul.f32.gmra.mxu0 %v700
  %v740 = vpop.f32.mrf.mxu0
  %v741 = vadd.f32 %v676, %v740
  %742 = vmatmul.f32.gmra.mxu0 %v703
  %v743 = vpop.f32.mrf.mxu0
  %v744 = vadd.f32 %v678, %v743
  %745 = vmatmul.f32.gmra.mxu0 %v706
  %v746 = vpop.f32.mrf.mxu0
  %v747 = vadd.f32 %v680, %v746
  %748 = vmatmul.f32.gmra.mxu0 %v709
  %v749 = vpop.f32.mrf.mxu0
  %v750 = vadd.f32 %v682, %v749
  %751 = vmatmul.f32.gmra.mxu0 %v712
  %v752 = vpop.f32.mrf.mxu0
  %v753 = vadd.f32 %v684, %v752
  %754 = vmatmul.f32.gmra.mxu0 %v715
  %v755 = vpop.f32.mrf.mxu0
  %v756 = vadd.f32 %v686, %v755
  %757 = vmatmul.f32.gmra.mxu0 %v718
  %v758 = vpop.f32.mrf.mxu0
  %v759 = vadd.f32 %v688, %v758
  %760 = vmatmul.f32.gmra.mxu0 %v721
  %v761 = vpop.f32.mrf.mxu0
  %v762 = vadd.f32 %v690, %v761
  %763 = vdwg.mxu0
  %v764 = vmax.f32 %v741, 0.0
  %v765 = vmax.f32 %v744, 0.0
  %v766 = vmax.f32 %v747, 0.0
  %v767 = vmax.f32 %v750, 0.0
  %v768 = vmax.f32 %v753, 0.0
  %v769 = vmax.f32 %v756, 0.0
  %v770 = vmax.f32 %v759, 0.0
  %v771 = vmax.f32 %v762, 0.0
  %v772 = vadd.f32 %v764, 1e-07
  %v773 = vadd.f32 %v765, 1e-07
  %v774 = vadd.f32 %v766, 1e-07
  %v775 = vadd.f32 %v767, 1e-07
  %v776 = vadd.f32 %v768, 1e-07
  %v777 = vadd.f32 %v769, 1e-07
  %v778 = vadd.f32 %v770, 1e-07
  %v779 = vadd.f32 %v771, 1e-07
  %v780 = vld [vmem:[%s4] sm:$0xff]
  %v781 = vld [vmem:[%s4 + $0x8] sm:$0xff]
  %v782 = vld [vmem:[%s4 + $0x10] sm:$0xff]
  %v783 = vld [vmem:[%s4 + $0x18] sm:$0xff]
  %v784 = vld [vmem:[%s4 + $0x20] sm:$0xff]
  %v785 = vld [vmem:[%s4 + $0x28] sm:$0xff]
  %v786 = vld [vmem:[%s4 + $0x30] sm:$0xff]
  %v787 = vld [vmem:[%s4 + $0x38] sm:$0xff]
  %788 = vrot.lane.b32.xlu0 %v539, 64
  %v789 = vpop.permute.xlu0 %788
  %790 = vrot.lane.b32.xlu0 %v542, 64
  %v791 = vpop.permute.xlu0 %790
  %792 = vrot.lane.b32.xlu0 %v545, 64
  %v793 = vpop.permute.xlu0 %792
  %794 = vrot.lane.b32.xlu0 %v548, 64
  %v795 = vpop.permute.xlu0 %794
  %796 = vrot.lane.b32.xlu0 %v551, 64
  %v797 = vpop.permute.xlu0 %796
  %798 = vrot.lane.b32.xlu0 %v554, 64
  %v799 = vpop.permute.xlu0 %798
  %800 = vrot.lane.b32.xlu0 %v557, 64
  %v801 = vpop.permute.xlu0 %800
  %802 = vrot.lane.b32.xlu0 %v560, 64
  %v803 = vpop.permute.xlu0 %802
  %v813 = vsel %vm36, %v780, 0
  %v816 = vsel %vm36, %v781, 0
  %v819 = vsel %vm36, %v782, 0
  %v822 = vsel %vm36, %v783, 0
  %v825 = vsel %vm36, %v784, 0
  %v828 = vsel %vm36, %v785, 0
  %v831 = vsel %vm36, %v786, 0
  %v834 = vsel %vm36, %v787, 0
  %836 = vmatpush.msra.mxu0 0.0
  %837 = vmatpush.msra.mxu0 0.0
  %838 = vmatpush.msra.mxu0 0.0
  %839 = vmatpush.msra.mxu0 0.0
  %840 = vmatpush.msra.mxu0 0.0
  %841 = vmatpush.msra.mxu0 0.0
  %842 = vmatpush.msra.mxu0 0.0
  %843 = vmatpush.msra.mxu0 0.0
  %844 = vmatpush.msra.mxu0 0.0
  %845 = vmatpush.msra.mxu0 0.0
  %846 = vmatpush.msra.mxu0 0.0
  %847 = vmatpush.msra.mxu0 0.0
  %848 = vmatpush.msra.mxu0 0.0
  %849 = vmatpush.msra.mxu0 %v105
  %850 = vmatpush.msra.mxu0 %v102
  %851 = vmatpush.msra.mxu0 %v99
  %852 = vmatmul.f32.gmra.mxu0 %v813
  %v853 = vpop.f32.mrf.mxu0
  %v854 = vadd.f32 %v789, %v853
  %855 = vmatmul.f32.gmra.mxu0 %v816
  %v856 = vpop.f32.mrf.mxu0
  %v857 = vadd.f32 %v791, %v856
  %858 = vmatmul.f32.gmra.mxu0 %v819
  %v859 = vpop.f32.mrf.mxu0
  %v860 = vadd.f32 %v793, %v859
  %861 = vmatmul.f32.gmra.mxu0 %v822
  %v862 = vpop.f32.mrf.mxu0
  %v863 = vadd.f32 %v795, %v862
  %864 = vmatmul.f32.gmra.mxu0 %v825
  %v865 = vpop.f32.mrf.mxu0
  %v866 = vadd.f32 %v797, %v865
  %867 = vmatmul.f32.gmra.mxu0 %v828
  %v868 = vpop.f32.mrf.mxu0
  %v869 = vadd.f32 %v799, %v868
  %870 = vmatmul.f32.gmra.mxu0 %v831
  %v871 = vpop.f32.mrf.mxu0
  %v872 = vadd.f32 %v801, %v871
  %873 = vmatmul.f32.gmra.mxu0 %v834
  %v874 = vpop.f32.mrf.mxu0
  %v875 = vadd.f32 %v803, %v874
  %876 = vdwg.mxu0
  %v877 = vmax.f32 %v854, 0.0
  %v878 = vmax.f32 %v857, 0.0
  %v879 = vmax.f32 %v860, 0.0
  %v880 = vmax.f32 %v863, 0.0
  %v881 = vmax.f32 %v866, 0.0
  %v882 = vmax.f32 %v869, 0.0
  %v883 = vmax.f32 %v872, 0.0
  %v884 = vmax.f32 %v875, 0.0
  %v885 = vadd.f32 %v877, 1e-07
  %v886 = vadd.f32 %v878, 1e-07
  %v887 = vadd.f32 %v879, 1e-07
  %v888 = vadd.f32 %v880, 1e-07
  %v889 = vadd.f32 %v881, 1e-07
  %v890 = vadd.f32 %v882, 1e-07
  %v891 = vadd.f32 %v883, 1e-07
  %v892 = vadd.f32 %v884, 1e-07
  %v893 = vld [vmem:[%s4 + $0x40] sm:$0xff]
  %v894 = vld [vmem:[%s4 + $0x48] sm:$0xff]
  %v895 = vld [vmem:[%s4 + $0x50] sm:$0xff]
  %v896 = vld [vmem:[%s4 + $0x58] sm:$0xff]
  %v897 = vld [vmem:[%s4 + $0x60] sm:$0xff]
  %v898 = vld [vmem:[%s4 + $0x68] sm:$0xff]
  %v899 = vld [vmem:[%s4 + $0x70] sm:$0xff]
  %v900 = vld [vmem:[%s4 + $0x78] sm:$0xff]
  %904 = vrot.lane.b32.xlu0 %v99, 96
  %v905 = vpop.permute.xlu0 %904
  %906 = vrot.lane.b32.xlu0 %v102, 96
  %v907 = vpop.permute.xlu0 %906
  %908 = vrot.lane.b32.xlu0 %v105, 96
  %v909 = vpop.permute.xlu0 %908
  %913 = vrot.lane.b32.xlu0 %v539, 32
  %v914 = vpop.permute.xlu0 %913
  %915 = vrot.lane.b32.xlu0 %v542, 32
  %v916 = vpop.permute.xlu0 %915
  %917 = vrot.lane.b32.xlu0 %v545, 32
  %v918 = vpop.permute.xlu0 %917
  %919 = vrot.lane.b32.xlu0 %v548, 32
  %v920 = vpop.permute.xlu0 %919
  %921 = vrot.lane.b32.xlu0 %v551, 32
  %v922 = vpop.permute.xlu0 %921
  %923 = vrot.lane.b32.xlu0 %v554, 32
  %v924 = vpop.permute.xlu0 %923
  %925 = vrot.lane.b32.xlu0 %v557, 32
  %v926 = vpop.permute.xlu0 %925
  %927 = vrot.lane.b32.xlu0 %v560, 32
  %v928 = vpop.permute.xlu0 %927
  %v938 = vsel %vm36, %v893, 0
  %v941 = vsel %vm36, %v894, 0
  %v944 = vsel %vm36, %v895, 0
  %v947 = vsel %vm36, %v896, 0
  %v950 = vsel %vm36, %v897, 0
  %v953 = vsel %vm36, %v898, 0
  %v956 = vsel %vm36, %v899, 0
  %v959 = vsel %vm36, %v900, 0
  %961 = vmatpush.msra.mxu0 0.0
  %962 = vmatpush.msra.mxu0 0.0
  %963 = vmatpush.msra.mxu0 0.0
  %964 = vmatpush.msra.mxu0 0.0
  %965 = vmatpush.msra.mxu0 0.0
  %966 = vmatpush.msra.mxu0 0.0
  %967 = vmatpush.msra.mxu0 0.0
  %968 = vmatpush.msra.mxu0 0.0
  %969 = vmatpush.msra.mxu0 0.0
  %970 = vmatpush.msra.mxu0 0.0
  %971 = vmatpush.msra.mxu0 0.0
  %972 = vmatpush.msra.mxu0 0.0
  %973 = vmatpush.msra.mxu0 0.0
  %974 = vmatpush.msra.mxu0 %v909
  %975 = vmatpush.msra.mxu0 %v907
  %976 = vmatpush.msra.mxu0 %v905
  %977 = vmatmul.f32.gmra.mxu0 %v938
  %v978 = vpop.f32.mrf.mxu0
  %v979 = vadd.f32 %v914, %v978
  %980 = vmatmul.f32.gmra.mxu0 %v941
  %v981 = vpop.f32.mrf.mxu0
  %v982 = vadd.f32 %v916, %v981
  %983 = vmatmul.f32.gmra.mxu0 %v944
  %v984 = vpop.f32.mrf.mxu0
  %v985 = vadd.f32 %v918, %v984
  %986 = vmatmul.f32.gmra.mxu0 %v947
  %v987 = vpop.f32.mrf.mxu0
  %v988 = vadd.f32 %v920, %v987
  %989 = vmatmul.f32.gmra.mxu0 %v950
  %v990 = vpop.f32.mrf.mxu0
  %v991 = vadd.f32 %v922, %v990
  %992 = vmatmul.f32.gmra.mxu0 %v953
  %v993 = vpop.f32.mrf.mxu0
  %v994 = vadd.f32 %v924, %v993
  %995 = vmatmul.f32.gmra.mxu0 %v956
  %v996 = vpop.f32.mrf.mxu0
  %v997 = vadd.f32 %v926, %v996
  %998 = vmatmul.f32.gmra.mxu0 %v959
  %v999 = vpop.f32.mrf.mxu0
  %v1000 = vadd.f32 %v928, %v999
  %1001 = vdwg.mxu0
  %v1002 = vmax.f32 %v979, 0.0
  %v1003 = vmax.f32 %v982, 0.0
  %v1004 = vmax.f32 %v985, 0.0
  %v1005 = vmax.f32 %v988, 0.0
  %v1006 = vmax.f32 %v991, 0.0
  %v1007 = vmax.f32 %v994, 0.0
  %v1008 = vmax.f32 %v997, 0.0
  %v1009 = vmax.f32 %v1000, 0.0
  %v1010 = vadd.f32 %v1002, 1e-07
  %v1011 = vadd.f32 %v1003, 1e-07
  %v1012 = vadd.f32 %v1004, 1e-07
  %v1013 = vadd.f32 %v1005, 1e-07
  %v1014 = vadd.f32 %v1006, 1e-07
  %v1015 = vadd.f32 %v1007, 1e-07
  %v1016 = vadd.f32 %v1008, 1e-07
  %v1017 = vadd.f32 %v1009, 1e-07
  %v1018 = vld [vmem:[%s5] sm:$0xff]
  %v1019 = vld [vmem:[%s5 + $0x8] sm:$0xff]
  %v1020 = vld [vmem:[%s5 + $0x10] sm:$0xff]
  %v1021 = vld [vmem:[%s5 + $0x18] sm:$0xff]
  %v1022 = vld [vmem:[%s5 + $0x20] sm:$0xff]
  %v1023 = vld [vmem:[%s6 + $0x3a8] sm:$0xff]
  %v1024 = vld [vmem:[%s6 + $0x3b0] sm:$0xff]
  %v1025 = vld [vmem:[%s6 + $0x3b8] sm:$0xff]
  %v1026 = vld [vmem:[%s6 + $0x3c0] sm:$0xff]
  %v1027 = vld [vmem:[%s6 + $0x428] sm:$0xff]
  %v1028 = vld [vmem:[%s6 + $0x430] sm:$0xff]
  %v1029 = vld [vmem:[%s6 + $0x438] sm:$0xff]
  %v1030 = vld [vmem:[%s6 + $0x440] sm:$0xff]
  %v1031 = vld [vmem:[%s6 + $0x448] sm:$0xff]
  %v1032 = vld [vmem:[%s6 + $0x450] sm:$0xff]
  %v1033 = vld [vmem:[%s6 + $0x458] sm:$0xff]
  %v1034 = vld [vmem:[%s6 + $0x460] sm:$0xff]
  %v1035 = vld [vmem:[%s6 + $0x468] sm:$0xff]
  %v1036 = vld [vmem:[%s6 + $0x470] sm:$0xff]
  %v1037 = vld [vmem:[%s6 + $0x478] sm:$0xff]
  %v1038 = vld [vmem:[%s6 + $0x480] sm:$0xff]
  %v1039 = vld [vmem:[%s6 + $0x488] sm:$0xff]
  %v1040 = vld [vmem:[%s6 + $0x490] sm:$0xff]
  %v1041 = vld [vmem:[%s6 + $0x498] sm:$0xff]
  %v1042 = vld [vmem:[%s6 + $0x4a0] sm:$0xff]
  %1043 = vrot.lane.b32.xlu0 %v61, 64
  %v1044 = vpop.permute.xlu0 %1043
  %1045 = vrot.lane.b32.xlu0 %v64, 64
  %v1046 = vpop.permute.xlu0 %1045
  %vm1049 = vcmask 523264
  %v1051 = vsel %vm1049, %v1018, 0
  %v1054 = vsel %vm1049, %v1019, 0
  %1056 = vmatpush.msra.mxu0 0.0
  %1057 = vmatpush.msra.mxu0 0.0
  %1058 = vmatpush.msra.mxu0 0.0
  %1059 = vmatpush.msra.mxu0 0.0
  %1060 = vmatpush.msra.mxu0 0.0
  %1061 = vmatpush.msra.mxu0 0.0
  %1062 = vmatpush.msra.mxu0 0.0
  %1063 = vmatpush.msra.mxu0 0.0
  %1064 = vmatpush.msra.mxu0 %v650
  %1065 = vmatpush.msra.mxu0 %v649
  %1066 = vmatpush.msra.mxu0 %v648
  %1067 = vmatpush.msra.mxu0 %v647
  %1068 = vmatpush.msra.mxu0 %v646
  %1069 = vmatpush.msra.mxu0 %v645
  %1070 = vmatpush.msra.mxu0 %v644
  %1071 = vmatpush.msra.mxu0 %v643
  %1072 = vmatmul.f32.gmra.mxu0 %v1051
  %v1073 = vpop.f32.mrf.mxu0
  %v1074 = vadd.f32 %v1044, %v1073
  %1075 = vmatmul.f32.gmra.mxu0 %v1054
  %v1076 = vpop.f32.mrf.mxu0
  %v1077 = vadd.f32 %v1046, %v1076
  %1078 = vdwg.mxu0
  %vm1079 = vcmask 261120
  %v1081 = vsel %vm1079, %v1074, 0
  %v1084 = vsel %vm1079, %v1077, 0
  %1086 = vmatpush.msra.mxu0 0.0
  %1087 = vmatpush.msra.mxu0 0.0
  %1088 = vmatpush.msra.mxu0 0.0
  %1089 = vmatpush.msra.mxu0 0.0
  %1090 = vmatpush.msra.mxu0 0.0
  %1091 = vmatpush.msra.mxu0 0.0
  %1092 = vmatpush.msra.mxu0 0.0
  %1093 = vmatpush.msra.mxu0 0.0
  %1094 = vmatpush.msra.mxu0 0.0
  %1095 = vmatpush.msra.mxu0 0.0
  %1096 = vmatpush.msra.mxu0 0.0
  %1097 = vmatpush.msra.mxu0 0.0
  %1098 = vmatpush.msra.mxu0 %v1026
  %1099 = vmatpush.msra.mxu0 %v1025
  %1100 = vmatpush.msra.mxu0 %v1024
  %1101 = vmatpush.msra.mxu0 %v1023
  %1102 = vmatmul.f32.gmra.mxu0 %v1081
  %v1103 = vpop.f32.mrf.mxu0
  %v1104 = vadd.f32 0.0, %v1103
  %1105 = vmatmul.f32.gmra.mxu0 %v1084
  %v1106 = vpop.f32.mrf.mxu0
  %v1107 = vadd.f32 0.0, %v1106
  %1108 = vdwg.mxu0
  %v1109 = vadd.f32 %v1104, %v1107
  %v1110 = vrot.slane %v1109, 4
  %v1111 = vadd.f32 %v1109, %v1110
  %v1112 = vrot.slane %v1111, 2
  %v1113 = vadd.f32 %v1111, %v1112
  %v1114 = vrot.slane %v1113, 1
  %v1115 = vadd.f32 %v1113, %v1114
  %v1116 = vrcp.pop 16.0
  %v1117 = vmul.f32 16.0, %v1116
  %v1118 = vsub.f32 1.0, %v1117
  %v1119 = vmul.f32 %v1116, %v1118
  %v1120 = vadd.f32 %v1116, %v1119
  %vm1121 = vweird.f32 %v1116
  %v1122 = vsel %vm1121, %v1116, %v1120
  %v1123 = vmul.f32 %v1115, %v1122
  %v1124 = vsub.f32 %v1104, %v1123
  %v1125 = vsub.f32 %v1107, %v1123
  %v1126 = vmul.f32 %v1124, %v1124
  %v1127 = vmul.f32 %v1125, %v1125
  %v1128 = vadd.f32 %v1126, %v1127
  %v1129 = vrot.slane %v1128, 4
  %v1130 = vadd.f32 %v1128, %v1129
  %v1131 = vrot.slane %v1130, 2
  %v1132 = vadd.f32 %v1130, %v1131
  %v1133 = vrot.slane %v1132, 1
  %v1134 = vadd.f32 %v1132, %v1133
  %v1135 = vmul.f32 %v1134, %v1122
  %v1136 = vadd.f32 %v1135, 1e-05
  %v1137 = vrsqrt.pop %v1136
  %v1138 = vmul.f32 %v1137, %v1136
  %v1139 = vmul.f32 %v1138, %v1137
  %v1140 = vmul.f32 0.5, %v1139
  %v1141 = vsub.f32 1.5, %v1140
  %v1142 = vmul.f32 %v1137, %v1141
  %vm1143 = vweird.f32 %v1136
  %vm1144 = vweird.f32 %v1137
  %vm1145 = vmor %vm1143, %vm1144
  %v1146 = vsel %vm1145, %v1137, %v1142
  %v1147 = vmul.f32 %v1124, %v1146
  %v1148 = vmul.f32 %v1125, %v1146
  %v1149 = vperm.slane %v29, 0
  %v1150 = vmul.f32 %v1147, %v1149
  %v1151 = vmul.f32 %v1148, %v1149
  %v1152 = vperm.slane %v29, 1
  %v1153 = vadd.f32 %v1150, %v1152
  %v1154 = vadd.f32 %v1151, %v1152
  %v1155 = vmax.f32 %v1153, 0.0
  %v1156 = vmax.f32 %v1154, 0.0
  %v1157 = vld [vmem:[%s6 + $0x3e8] sm:$0xff]
  %v1158 = vld [vmem:[%s6 + $0x3f0] sm:$0xff]
  %v1159 = vld [vmem:[%s6 + $0x3f8] sm:$0xff]
  %v1160 = vld [vmem:[%s6 + $0x400] sm:$0xff]
  %v1161 = vld [vmem:[%s6 + $0x528] sm:$0xff]
  %v1162 = vld [vmem:[%s6 + $0x530] sm:$0xff]
  %v1163 = vld [vmem:[%s6 + $0x538] sm:$0xff]
  %v1164 = vld [vmem:[%s6 + $0x540] sm:$0xff]
  %v1165 = vld [vmem:[%s6 + $0x548] sm:$0xff]
  %v1166 = vld [vmem:[%s6 + $0x550] sm:$0xff]
  %v1167 = vld [vmem:[%s6 + $0x558] sm:$0xff]
  %v1168 = vld [vmem:[%s6 + $0x560] sm:$0xff]
  %v1169 = vld [vmem:[%s6 + $0x568] sm:$0xff]
  %v1170 = vld [vmem:[%s6 + $0x570] sm:$0xff]
  %v1171 = vld [vmem:[%s6 + $0x578] sm:$0xff]
  %v1172 = vld [vmem:[%s6 + $0x580] sm:$0xff]
  %v1173 = vld [vmem:[%s6 + $0x588] sm:$0xff]
  %v1174 = vld [vmem:[%s6 + $0x590] sm:$0xff]
  %v1175 = vld [vmem:[%s6 + $0x598] sm:$0xff]
  %v1176 = vld [vmem:[%s6 + $0x5a0] sm:$0xff]
  %1177 = vrot.lane.b32.xlu0 %v1018, 64
  %v1178 = vpop.permute.xlu0 %1177
  %1179 = vrot.lane.b32.xlu0 %v1019, 64
  %v1180 = vpop.permute.xlu0 %1179
  %1181 = vrot.lane.b32.xlu0 %v61, 32
  %v1182 = vpop.permute.xlu0 %1181
  %1183 = vrot.lane.b32.xlu0 %v64, 32
  %v1184 = vpop.permute.xlu0 %1183
  %v1187 = vsel %vm1049, %v1178, 0
  %v1189 = vsel %vm1049, %v1180, 0
  %1191 = vmatpush.msra.mxu0 0.0
  %1192 = vmatpush.msra.mxu0 0.0
  %1193 = vmatpush.msra.mxu0 0.0
  %1194 = vmatpush.msra.mxu0 0.0
  %1195 = vmatpush.msra.mxu0 0.0
  %1196 = vmatpush.msra.mxu0 0.0
  %1197 = vmatpush.msra.mxu0 0.0
  %1198 = vmatpush.msra.mxu0 0.0
  %1199 = vmatpush.msra.mxu0 %v892
  %1200 = vmatpush.msra.mxu0 %v891
  %1201 = vmatpush.msra.mxu0 %v890
  %1202 = vmatpush.msra.mxu0 %v889
  %1203 = vmatpush.msra.mxu0 %v888
  %1204 = vmatpush.msra.mxu0 %v887
  %1205 = vmatpush.msra.mxu0 %v886
  %1206 = vmatpush.msra.mxu0 %v885
  %1207 = vmatmul.f32.gmra.mxu0 %v1187
  %v1208 = vpop.f32.mrf.mxu0
  %v1209 = vadd.f32 %v1182, %v1208
  %1210 = vmatmul.f32.gmra.mxu0 %v1189
  %v1211 = vpop.f32.mrf.mxu0
  %v1212 = vadd.f32 %v1184, %v1211
  %1213 = vdwg.mxu0
  %v1215 = vsel %vm1079, %v1209, 0
  %v1218 = vsel %vm1079, %v1212, 0
  %1220 = vmatpush.msra.mxu0 0.0
  %1221 = vmatpush.msra.mxu0 0.0
  %1222 = vmatpush.msra.mxu0 0.0
  %1223 = vmatpush.msra.mxu0 0.0
  %1224 = vmatpush.msra.mxu0 0.0
  %1225 = vmatpush.msra.mxu0 0.0
  %1226 = vmatpush.msra.mxu0 0.0
  %1227 = vmatpush.msra.mxu0 0.0
  %1228 = vmatpush.msra.mxu0 0.0
  %1229 = vmatpush.msra.mxu0 0.0
  %1230 = vmatpush.msra.mxu0 0.0
  %1231 = vmatpush.msra.mxu0 0.0
  %1232 = vmatpush.msra.mxu0 %v1160
  %1233 = vmatpush.msra.mxu0 %v1159
  %1234 = vmatpush.msra.mxu0 %v1158
  %1235 = vmatpush.msra.mxu0 %v1157
  %1236 = vmatmul.f32.gmra.mxu0 %v1215
  %v1237 = vpop.f32.mrf.mxu0
  %v1238 = vadd.f32 0.0, %v1237
  %1239 = vmatmul.f32.gmra.mxu0 %v1218
  %v1240 = vpop.f32.mrf.mxu0
  %v1241 = vadd.f32 0.0, %v1240
  %1242 = vdwg.mxu0
  %v1243 = vadd.f32 %v1238, %v1241
  %v1244 = vrot.slane %v1243, 4
  %v1245 = vadd.f32 %v1243, %v1244
  %v1246 = vrot.slane %v1245, 2
  %v1247 = vadd.f32 %v1245, %v1246
  %v1248 = vrot.slane %v1247, 1
  %v1249 = vadd.f32 %v1247, %v1248
  %v1250 = vmul.f32 %v1249, %v1122
  %v1251 = vsub.f32 %v1238, %v1250
  %v1252 = vsub.f32 %v1241, %v1250
  %v1253 = vmul.f32 %v1251, %v1251
  %v1254 = vmul.f32 %v1252, %v1252
  %v1255 = vadd.f32 %v1253, %v1254
  %v1256 = vrot.slane %v1255, 4
  %v1257 = vadd.f32 %v1255, %v1256
  %v1258 = vrot.slane %v1257, 2
  %v1259 = vadd.f32 %v1257, %v1258
  %v1260 = vrot.slane %v1259, 1
  %v1261 = vadd.f32 %v1259, %v1260
  %v1262 = vmul.f32 %v1261, %v1122
  %v1263 = vadd.f32 %v1262, 1e-05
  %v1264 = vrsqrt.pop %v1263
  %v1265 = vmul.f32 %v1264, %v1263
  %v1266 = vmul.f32 %v1265, %v1264
  %v1267 = vmul.f32 0.5, %v1266
  %v1268 = vsub.f32 1.5, %v1267
  %v1269 = vmul.f32 %v1264, %v1268
  %vm1270 = vweird.f32 %v1263
  %vm1271 = vweird.f32 %v1264
  %vm1272 = vmor %vm1270, %vm1271
  %v1273 = vsel %vm1272, %v1264, %v1269
  %v1274 = vmul.f32 %v1251, %v1273
  %v1275 = vmul.f32 %v1252, %v1273
  %v1276 = vperm.slane %v29, 4
  %v1277 = vmul.f32 %v1274, %v1276
  %v1278 = vmul.f32 %v1275, %v1276
  %v1279 = vperm.slane %v29, 5
  %v1280 = vadd.f32 %v1277, %v1279
  %v1281 = vadd.f32 %v1278, %v1279
  %v1282 = vmax.f32 %v1280, 0.0
  %v1283 = vmax.f32 %v1281, 0.0
  %1284 = vmatpush.msra.mxu0 %v1176
  %1285 = vmatpush.msra.mxu0 %v1175
  %1286 = vmatpush.msra.mxu0 %v1174
  %1287 = vmatpush.msra.mxu0 %v1173
  %1288 = vmatpush.msra.mxu0 %v1172
  %1289 = vmatpush.msra.mxu0 %v1171
  %1290 = vmatpush.msra.mxu0 %v1170
  %1291 = vmatpush.msra.mxu0 %v1169
  %1292 = vmatpush.msra.mxu0 %v1168
  %1293 = vmatpush.msra.mxu0 %v1167
  %1294 = vmatpush.msra.mxu0 %v1166
  %1295 = vmatpush.msra.mxu0 %v1165
  %1296 = vmatpush.msra.mxu0 %v1164
  %1297 = vmatpush.msra.mxu0 %v1163
  %1298 = vmatpush.msra.mxu0 %v1162
  %1299 = vmatpush.msra.mxu0 %v1161
  %1300 = vmatmul.f32.gmra.mxu0 %v1282
  %v1301 = vpop.f32.mrf.mxu0
  %v1302 = vadd.f32 0.0, %v1301
  %1303 = vmatmul.f32.gmra.mxu0 %v1283
  %v1304 = vpop.f32.mrf.mxu0
  %v1305 = vadd.f32 0.0, %v1304
  %1306 = vdwg.mxu0
  %1307 = vmatpush.msra.mxu0 %v1042
  %1308 = vmatpush.msra.mxu0 %v1041
  %1309 = vmatpush.msra.mxu0 %v1040
  %1310 = vmatpush.msra.mxu0 %v1039
  %1311 = vmatpush.msra.mxu0 %v1038
  %1312 = vmatpush.msra.mxu0 %v1037
  %1313 = vmatpush.msra.mxu0 %v1036
  %1314 = vmatpush.msra.mxu0 %v1035
  %1315 = vmatpush.msra.mxu0 %v1034
  %1316 = vmatpush.msra.mxu0 %v1033
  %1317 = vmatpush.msra.mxu0 %v1032
  %1318 = vmatpush.msra.mxu0 %v1031
  %1319 = vmatpush.msra.mxu0 %v1030
  %1320 = vmatpush.msra.mxu0 %v1029
  %1321 = vmatpush.msra.mxu0 %v1028
  %1322 = vmatpush.msra.mxu0 %v1027
  %1323 = vmatmul.f32.gmra.mxu0 %v1155
  %v1324 = vpop.f32.mrf.mxu0
  %v1325 = vadd.f32 %v1302, %v1324
  %1326 = vmatmul.f32.gmra.mxu0 %v1156
  %v1327 = vpop.f32.mrf.mxu0
  %v1328 = vadd.f32 %v1305, %v1327
  %1329 = vdwg.mxu0
  %v1330 = vld [vmem:[%s6 + $0x3c8] sm:$0xff]
  %v1331 = vld [vmem:[%s6 + $0x3d0] sm:$0xff]
  %v1332 = vld [vmem:[%s6 + $0x3d8] sm:$0xff]
  %v1333 = vld [vmem:[%s6 + $0x3e0] sm:$0xff]
  %v1334 = vld [vmem:[%s6 + $0x4a8] sm:$0xff]
  %v1335 = vld [vmem:[%s6 + $0x4b0] sm:$0xff]
  %v1336 = vld [vmem:[%s6 + $0x4b8] sm:$0xff]
  %v1337 = vld [vmem:[%s6 + $0x4c0] sm:$0xff]
  %v1338 = vld [vmem:[%s6 + $0x4c8] sm:$0xff]
  %v1339 = vld [vmem:[%s6 + $0x4d0] sm:$0xff]
  %v1340 = vld [vmem:[%s6 + $0x4d8] sm:$0xff]
  %v1341 = vld [vmem:[%s6 + $0x4e0] sm:$0xff]
  %v1342 = vld [vmem:[%s6 + $0x4e8] sm:$0xff]
  %v1343 = vld [vmem:[%s6 + $0x4f0] sm:$0xff]
  %v1344 = vld [vmem:[%s6 + $0x4f8] sm:$0xff]
  %v1345 = vld [vmem:[%s6 + $0x500] sm:$0xff]
  %v1346 = vld [vmem:[%s6 + $0x508] sm:$0xff]
  %v1347 = vld [vmem:[%s6 + $0x510] sm:$0xff]
  %v1348 = vld [vmem:[%s6 + $0x518] sm:$0xff]
  %v1349 = vld [vmem:[%s6 + $0x520] sm:$0xff]
  %1350 = vrot.lane.b32.xlu0 %v99, 64
  %v1351 = vpop.permute.xlu0 %1350
  %1352 = vrot.lane.b32.xlu0 %v102, 64
  %v1353 = vpop.permute.xlu0 %1352
  %1354 = vrot.lane.b32.xlu0 %v105, 64
  %v1355 = vpop.permute.xlu0 %1354
  %v1360 = vsel %vm1049, %v1020, 0
  %v1363 = vsel %vm1049, %v1021, 0
  %v1366 = vsel %vm1049, %v1022, 0
  %1368 = vmatpush.msra.mxu0 0.0
  %1369 = vmatpush.msra.mxu0 0.0
  %1370 = vmatpush.msra.mxu0 0.0
  %1371 = vmatpush.msra.mxu0 0.0
  %1372 = vmatpush.msra.mxu0 0.0
  %1373 = vmatpush.msra.mxu0 0.0
  %1374 = vmatpush.msra.mxu0 0.0
  %1375 = vmatpush.msra.mxu0 0.0
  %1376 = vmatpush.msra.mxu0 %v779
  %1377 = vmatpush.msra.mxu0 %v778
  %1378 = vmatpush.msra.mxu0 %v777
  %1379 = vmatpush.msra.mxu0 %v776
  %1380 = vmatpush.msra.mxu0 %v775
  %1381 = vmatpush.msra.mxu0 %v774
  %1382 = vmatpush.msra.mxu0 %v773
  %1383 = vmatpush.msra.mxu0 %v772
  %1384 = vmatmul.f32.gmra.mxu0 %v1360
  %v1385 = vpop.f32.mrf.mxu0
  %v1386 = vadd.f32 %v1351, %v1385
  %1387 = vmatmul.f32.gmra.mxu0 %v1363
  %v1388 = vpop.f32.mrf.mxu0
  %v1389 = vadd.f32 %v1353, %v1388
  %1390 = vmatmul.f32.gmra.mxu0 %v1366
  %v1391 = vpop.f32.mrf.mxu0
  %v1392 = vadd.f32 %v1355, %v1391
  %1393 = vdwg.mxu0
  %v1395 = vsel %vm1079, %v1386, 0
  %v1398 = vsel %vm1079, %v1389, 0
  %v1401 = vsel %vm1079, %v1392, 0
  %1403 = vmatpush.msra.mxu0 0.0
  %1404 = vmatpush.msra.mxu0 0.0
  %1405 = vmatpush.msra.mxu0 0.0
  %1406 = vmatpush.msra.mxu0 0.0
  %1407 = vmatpush.msra.mxu0 0.0
  %1408 = vmatpush.msra.mxu0 0.0
  %1409 = vmatpush.msra.mxu0 0.0
  %1410 = vmatpush.msra.mxu0 0.0
  %1411 = vmatpush.msra.mxu0 0.0
  %1412 = vmatpush.msra.mxu0 0.0
  %1413 = vmatpush.msra.mxu0 0.0
  %1414 = vmatpush.msra.mxu0 0.0
  %1415 = vmatpush.msra.mxu0 %v1333
  %1416 = vmatpush.msra.mxu0 %v1332
  %1417 = vmatpush.msra.mxu0 %v1331
  %1418 = vmatpush.msra.mxu0 %v1330
  %1419 = vmatmul.f32.gmra.mxu0 %v1395
  %v1420 = vpop.f32.mrf.mxu0
  %v1421 = vadd.f32 0.0, %v1420
  %1422 = vmatmul.f32.gmra.mxu0 %v1398
  %v1423 = vpop.f32.mrf.mxu0
  %v1424 = vadd.f32 0.0, %v1423
  %1425 = vmatmul.f32.gmra.mxu0 %v1401
  %v1426 = vpop.f32.mrf.mxu0
  %v1427 = vadd.f32 0.0, %v1426
  %1428 = vdwg.mxu0
  %v1429 = vadd.f32 %v1421, %v1424
  %v1430 = vadd.f32 %v1429, %v1427
  %v1431 = vrot.slane %v1430, 4
  %v1432 = vadd.f32 %v1430, %v1431
  %v1433 = vrot.slane %v1432, 2
  %v1434 = vadd.f32 %v1432, %v1433
  %v1435 = vrot.slane %v1434, 1
  %v1436 = vadd.f32 %v1434, %v1435
  %v1437 = vrcp.pop 24.0
  %v1438 = vmul.f32 24.0, %v1437
  %v1439 = vsub.f32 1.0, %v1438
  %v1440 = vmul.f32 %v1437, %v1439
  %v1441 = vadd.f32 %v1437, %v1440
  %vm1442 = vweird.f32 %v1437
  %v1443 = vsel %vm1442, %v1437, %v1441
  %v1444 = vmul.f32 %v1436, %v1443
  %v1445 = vsub.f32 %v1421, %v1444
  %v1446 = vsub.f32 %v1424, %v1444
  %v1447 = vsub.f32 %v1427, %v1444
  %v1448 = vmul.f32 %v1445, %v1445
  %v1449 = vmul.f32 %v1446, %v1446
  %v1450 = vmul.f32 %v1447, %v1447
  %v1451 = vadd.f32 %v1448, %v1449
  %v1452 = vadd.f32 %v1451, %v1450
  %v1453 = vrot.slane %v1452, 4
  %v1454 = vadd.f32 %v1452, %v1453
  %v1455 = vrot.slane %v1454, 2
  %v1456 = vadd.f32 %v1454, %v1455
  %v1457 = vrot.slane %v1456, 1
  %v1458 = vadd.f32 %v1456, %v1457
  %v1459 = vmul.f32 %v1458, %v1443
  %v1460 = vadd.f32 %v1459, 1e-05
  %v1461 = vrsqrt.pop %v1460
  %v1462 = vmul.f32 %v1461, %v1460
  %v1463 = vmul.f32 %v1462, %v1461
  %v1464 = vmul.f32 0.5, %v1463
  %v1465 = vsub.f32 1.5, %v1464
  %v1466 = vmul.f32 %v1461, %v1465
  %vm1467 = vweird.f32 %v1460
  %vm1468 = vweird.f32 %v1461
  %vm1469 = vmor %vm1467, %vm1468
  %v1470 = vsel %vm1469, %v1461, %v1466
  %v1471 = vmul.f32 %v1445, %v1470
  %v1472 = vmul.f32 %v1446, %v1470
  %v1473 = vmul.f32 %v1447, %v1470
  %v1474 = vperm.slane %v29, 2
  %v1475 = vmul.f32 %v1471, %v1474
  %v1476 = vmul.f32 %v1472, %v1474
  %v1477 = vmul.f32 %v1473, %v1474
  %v1478 = vperm.slane %v29, 3
  %v1479 = vadd.f32 %v1475, %v1478
  %v1480 = vadd.f32 %v1476, %v1478
  %v1481 = vadd.f32 %v1477, %v1478
  %v1482 = vmax.f32 %v1479, 0.0
  %v1483 = vmax.f32 %v1480, 0.0
  %v1484 = vmax.f32 %v1481, 0.0
  %v1485 = vld [vmem:[%s6 + $0x408] sm:$0xff]
  %v1486 = vld [vmem:[%s6 + $0x410] sm:$0xff]
  %v1487 = vld [vmem:[%s6 + $0x418] sm:$0xff]
  %v1488 = vld [vmem:[%s6 + $0x420] sm:$0xff]
  %v1489 = vld [vmem:[%s6 + $0x5a8] sm:$0xff]
  %v1490 = vld [vmem:[%s6 + $0x5b0] sm:$0xff]
  %v1491 = vld [vmem:[%s6 + $0x5b8] sm:$0xff]
  %v1492 = vld [vmem:[%s6 + $0x5c0] sm:$0xff]
  %v1493 = vld [vmem:[%s6 + $0x5c8] sm:$0xff]
  %v1494 = vld [vmem:[%s6 + $0x5d0] sm:$0xff]
  %v1495 = vld [vmem:[%s6 + $0x5d8] sm:$0xff]
  %v1496 = vld [vmem:[%s6 + $0x5e0] sm:$0xff]
  %v1497 = vld [vmem:[%s6 + $0x5e8] sm:$0xff]
  %v1498 = vld [vmem:[%s6 + $0x5f0] sm:$0xff]
  %v1499 = vld [vmem:[%s6 + $0x5f8] sm:$0xff]
  %v1500 = vld [vmem:[%s6 + $0x600] sm:$0xff]
  %v1501 = vld [vmem:[%s6 + $0x608] sm:$0xff]
  %v1502 = vld [vmem:[%s6 + $0x610] sm:$0xff]
  %v1503 = vld [vmem:[%s6 + $0x618] sm:$0xff]
  %v1504 = vld [vmem:[%s6 + $0x620] sm:$0xff]
  %1505 = vrot.lane.b32.xlu0 %v1020, 64
  %v1506 = vpop.permute.xlu0 %1505
  %1507 = vrot.lane.b32.xlu0 %v1021, 64
  %v1508 = vpop.permute.xlu0 %1507
  %1509 = vrot.lane.b32.xlu0 %v1022, 64
  %v1510 = vpop.permute.xlu0 %1509
  %1511 = vrot.lane.b32.xlu0 %v99, 32
  %v1512 = vpop.permute.xlu0 %1511
  %1513 = vrot.lane.b32.xlu0 %v102, 32
  %v1514 = vpop.permute.xlu0 %1513
  %1515 = vrot.lane.b32.xlu0 %v105, 32
  %v1516 = vpop.permute.xlu0 %1515
  %v1520 = vsel %vm1049, %v1506, 0
  %v1522 = vsel %vm1049, %v1508, 0
  %v1524 = vsel %vm1049, %v1510, 0
  %1526 = vmatpush.msra.mxu0 0.0
  %1527 = vmatpush.msra.mxu0 0.0
  %1528 = vmatpush.msra.mxu0 0.0
  %1529 = vmatpush.msra.mxu0 0.0
  %1530 = vmatpush.msra.mxu0 0.0
  %1531 = vmatpush.msra.mxu0 0.0
  %1532 = vmatpush.msra.mxu0 0.0
  %1533 = vmatpush.msra.mxu0 0.0
  %1534 = vmatpush.msra.mxu0 %v1017
  %1535 = vmatpush.msra.mxu0 %v1016
  %1536 = vmatpush.msra.mxu0 %v1015
  %1537 = vmatpush.msra.mxu0 %v1014
  %1538 = vmatpush.msra.mxu0 %v1013
  %1539 = vmatpush.msra.mxu0 %v1012
  %1540 = vmatpush.msra.mxu0 %v1011
  %1541 = vmatpush.msra.mxu0 %v1010
  %1542 = vmatmul.f32.gmra.mxu0 %v1520
  %v1543 = vpop.f32.mrf.mxu0
  %v1544 = vadd.f32 %v1512, %v1543
  %1545 = vmatmul.f32.gmra.mxu0 %v1522
  %v1546 = vpop.f32.mrf.mxu0
  %v1547 = vadd.f32 %v1514, %v1546
  %1548 = vmatmul.f32.gmra.mxu0 %v1524
  %v1549 = vpop.f32.mrf.mxu0
  %v1550 = vadd.f32 %v1516, %v1549
  %1551 = vdwg.mxu0
  %v1553 = vsel %vm1079, %v1544, 0
  %v1556 = vsel %vm1079, %v1547, 0
  %v1559 = vsel %vm1079, %v1550, 0
  %1561 = vmatpush.msra.mxu0 0.0
  %1562 = vmatpush.msra.mxu0 0.0
  %1563 = vmatpush.msra.mxu0 0.0
  %1564 = vmatpush.msra.mxu0 0.0
  %1565 = vmatpush.msra.mxu0 0.0
  %1566 = vmatpush.msra.mxu0 0.0
  %1567 = vmatpush.msra.mxu0 0.0
  %1568 = vmatpush.msra.mxu0 0.0
  %1569 = vmatpush.msra.mxu0 0.0
  %1570 = vmatpush.msra.mxu0 0.0
  %1571 = vmatpush.msra.mxu0 0.0
  %1572 = vmatpush.msra.mxu0 0.0
  %1573 = vmatpush.msra.mxu0 %v1488
  %1574 = vmatpush.msra.mxu0 %v1487
  %1575 = vmatpush.msra.mxu0 %v1486
  %1576 = vmatpush.msra.mxu0 %v1485
  %1577 = vmatmul.f32.gmra.mxu0 %v1553
  %v1578 = vpop.f32.mrf.mxu0
  %v1579 = vadd.f32 0.0, %v1578
  %1580 = vmatmul.f32.gmra.mxu0 %v1556
  %v1581 = vpop.f32.mrf.mxu0
  %v1582 = vadd.f32 0.0, %v1581
  %1583 = vmatmul.f32.gmra.mxu0 %v1559
  %v1584 = vpop.f32.mrf.mxu0
  %v1585 = vadd.f32 0.0, %v1584
  %1586 = vdwg.mxu0
  %v1587 = vadd.f32 %v1579, %v1582
  %v1588 = vadd.f32 %v1587, %v1585
  %v1589 = vrot.slane %v1588, 4
  %v1590 = vadd.f32 %v1588, %v1589
  %v1591 = vrot.slane %v1590, 2
  %v1592 = vadd.f32 %v1590, %v1591
  %v1593 = vrot.slane %v1592, 1
  %v1594 = vadd.f32 %v1592, %v1593
  %v1595 = vmul.f32 %v1594, %v1443
  %v1596 = vsub.f32 %v1579, %v1595
  %v1597 = vsub.f32 %v1582, %v1595
  %v1598 = vsub.f32 %v1585, %v1595
  %v1599 = vmul.f32 %v1596, %v1596
  %v1600 = vmul.f32 %v1597, %v1597
  %v1601 = vmul.f32 %v1598, %v1598
  %v1602 = vadd.f32 %v1599, %v1600
  %v1603 = vadd.f32 %v1602, %v1601
  %v1604 = vrot.slane %v1603, 4
  %v1605 = vadd.f32 %v1603, %v1604
  %v1606 = vrot.slane %v1605, 2
  %v1607 = vadd.f32 %v1605, %v1606
  %v1608 = vrot.slane %v1607, 1
  %v1609 = vadd.f32 %v1607, %v1608
  %v1610 = vmul.f32 %v1609, %v1443
  %v1611 = vadd.f32 %v1610, 1e-05
  %v1612 = vrsqrt.pop %v1611
  %v1613 = vmul.f32 %v1612, %v1611
  %v1614 = vmul.f32 %v1613, %v1612
  %v1615 = vmul.f32 0.5, %v1614
  %v1616 = vsub.f32 1.5, %v1615
  %v1617 = vmul.f32 %v1612, %v1616
  %vm1618 = vweird.f32 %v1611
  %vm1619 = vweird.f32 %v1612
  %vm1620 = vmor %vm1618, %vm1619
  %v1621 = vsel %vm1620, %v1612, %v1617
  %v1622 = vmul.f32 %v1596, %v1621
  %v1623 = vmul.f32 %v1597, %v1621
  %v1624 = vmul.f32 %v1598, %v1621
  %v1625 = vperm.slane %v29, 6
  %v1626 = vmul.f32 %v1622, %v1625
  %v1627 = vmul.f32 %v1623, %v1625
  %v1628 = vmul.f32 %v1624, %v1625
  %v1629 = vperm.slane %v29, 7
  %v1630 = vadd.f32 %v1626, %v1629
  %v1631 = vadd.f32 %v1627, %v1629
  %v1632 = vadd.f32 %v1628, %v1629
  %v1633 = vmax.f32 %v1630, 0.0
  %v1634 = vmax.f32 %v1631, 0.0
  %v1635 = vmax.f32 %v1632, 0.0
  %1636 = vmatpush.msra.mxu0 %v1504
  %1637 = vmatpush.msra.mxu0 %v1503
  %1638 = vmatpush.msra.mxu0 %v1502
  %1639 = vmatpush.msra.mxu0 %v1501
  %1640 = vmatpush.msra.mxu0 %v1500
  %1641 = vmatpush.msra.mxu0 %v1499
  %1642 = vmatpush.msra.mxu0 %v1498
  %1643 = vmatpush.msra.mxu0 %v1497
  %1644 = vmatpush.msra.mxu0 %v1496
  %1645 = vmatpush.msra.mxu0 %v1495
  %1646 = vmatpush.msra.mxu0 %v1494
  %1647 = vmatpush.msra.mxu0 %v1493
  %1648 = vmatpush.msra.mxu0 %v1492
  %1649 = vmatpush.msra.mxu0 %v1491
  %1650 = vmatpush.msra.mxu0 %v1490
  %1651 = vmatpush.msra.mxu0 %v1489
  %1652 = vmatmul.f32.gmra.mxu0 %v1633
  %v1653 = vpop.f32.mrf.mxu0
  %v1654 = vadd.f32 0.0, %v1653
  %1655 = vmatmul.f32.gmra.mxu0 %v1634
  %v1656 = vpop.f32.mrf.mxu0
  %v1657 = vadd.f32 0.0, %v1656
  %1658 = vmatmul.f32.gmra.mxu0 %v1635
  %v1659 = vpop.f32.mrf.mxu0
  %v1660 = vadd.f32 0.0, %v1659
  %1661 = vdwg.mxu0
  %1662 = vmatpush.msra.mxu0 %v1349
  %1663 = vmatpush.msra.mxu0 %v1348
  %1664 = vmatpush.msra.mxu0 %v1347
  %1665 = vmatpush.msra.mxu0 %v1346
  %1666 = vmatpush.msra.mxu0 %v1345
  %1667 = vmatpush.msra.mxu0 %v1344
  %1668 = vmatpush.msra.mxu0 %v1343
  %1669 = vmatpush.msra.mxu0 %v1342
  %1670 = vmatpush.msra.mxu0 %v1341
  %1671 = vmatpush.msra.mxu0 %v1340
  %1672 = vmatpush.msra.mxu0 %v1339
  %1673 = vmatpush.msra.mxu0 %v1338
  %1674 = vmatpush.msra.mxu0 %v1337
  %1675 = vmatpush.msra.mxu0 %v1336
  %1676 = vmatpush.msra.mxu0 %v1335
  %1677 = vmatpush.msra.mxu0 %v1334
  %1678 = vmatmul.f32.gmra.mxu0 %v1482
  %v1679 = vpop.f32.mrf.mxu0
  %v1680 = vadd.f32 %v1654, %v1679
  %1681 = vmatmul.f32.gmra.mxu0 %v1483
  %v1682 = vpop.f32.mrf.mxu0
  %v1683 = vadd.f32 %v1657, %v1682
  %1684 = vmatmul.f32.gmra.mxu0 %v1484
  %v1685 = vpop.f32.mrf.mxu0
  %v1686 = vadd.f32 %v1660, %v1685
  %1687 = vdwg.mxu0
  %v1688 = vadd.f32 %v1325, %v1328
  %v1689 = vrot.slane %v1688, 4
  %v1690 = vadd.f32 %v1688, %v1689
  %v1691 = vrot.slane %v1690, 2
  %v1692 = vadd.f32 %v1690, %v1691
  %v1693 = vrot.slane %v1692, 1
  %v1694 = vadd.f32 %v1692, %v1693
  %v1695 = vmul.f32 %v1694, %v1122
  %v1696 = vsub.f32 %v1325, %v1695
  %v1697 = vsub.f32 %v1328, %v1695
  %v1698 = vmul.f32 %v1696, %v1696
  %v1699 = vmul.f32 %v1697, %v1697
  %v1700 = vadd.f32 %v1698, %v1699
  %v1701 = vrot.slane %v1700, 4
  %v1702 = vadd.f32 %v1700, %v1701
  %v1703 = vrot.slane %v1702, 2
  %v1704 = vadd.f32 %v1702, %v1703
  %v1705 = vrot.slane %v1704, 1
  %v1706 = vadd.f32 %v1704, %v1705
  %v1707 = vmul.f32 %v1706, %v1122
  %v1708 = vadd.f32 %v1707, 1e-05
  %v1709 = vrsqrt.pop %v1708
  %v1710 = vmul.f32 %v1709, %v1708
  %v1711 = vmul.f32 %v1710, %v1709
  %v1712 = vmul.f32 0.5, %v1711
  %v1713 = vsub.f32 1.5, %v1712
  %v1714 = vmul.f32 %v1709, %v1713
  %vm1715 = vweird.f32 %v1708
  %vm1716 = vweird.f32 %v1709
  %vm1717 = vmor %vm1715, %vm1716
  %v1718 = vsel %vm1717, %v1709, %v1714
  %v1719 = vmul.f32 %v1696, %v1718
  %v1720 = vmul.f32 %v1697, %v1718
  %v1721 = vperm.slane %v30, 0
  %v1722 = vmul.f32 %v1719, %v1721
  %v1723 = vmul.f32 %v1720, %v1721
  %v1724 = vperm.slane %v30, 1
  %v1725 = vadd.f32 %v1722, %v1724
  %v1726 = vadd.f32 %v1723, %v1724
  %v1727 = vadd.f32 %v1680, %v1683
  %v1728 = vadd.f32 %v1727, %v1686
  %v1729 = vrot.slane %v1728, 4
  %v1730 = vadd.f32 %v1728, %v1729
  %v1731 = vrot.slane %v1730, 2
  %v1732 = vadd.f32 %v1730, %v1731
  %v1733 = vrot.slane %v1732, 1
  %v1734 = vadd.f32 %v1732, %v1733
  %v1735 = vmul.f32 %v1734, %v1443
  %v1736 = vsub.f32 %v1680, %v1735
  %v1737 = vsub.f32 %v1683, %v1735
  %v1738 = vsub.f32 %v1686, %v1735
  %v1739 = vmul.f32 %v1736, %v1736
  %v1740 = vmul.f32 %v1737, %v1737
  %v1741 = vmul.f32 %v1738, %v1738
  %v1742 = vadd.f32 %v1739, %v1740
  %v1743 = vadd.f32 %v1742, %v1741
  %v1744 = vrot.slane %v1743, 4
  %v1745 = vadd.f32 %v1743, %v1744
  %v1746 = vrot.slane %v1745, 2
  %v1747 = vadd.f32 %v1745, %v1746
  %v1748 = vrot.slane %v1747, 1
  %v1749 = vadd.f32 %v1747, %v1748
  %v1750 = vmul.f32 %v1749, %v1443
  %v1751 = vadd.f32 %v1750, 1e-05
  %v1752 = vrsqrt.pop %v1751
  %v1753 = vmul.f32 %v1752, %v1751
  %v1754 = vmul.f32 %v1753, %v1752
  %v1755 = vmul.f32 0.5, %v1754
  %v1756 = vsub.f32 1.5, %v1755
  %v1757 = vmul.f32 %v1752, %v1756
  %vm1758 = vweird.f32 %v1751
  %vm1759 = vweird.f32 %v1752
  %vm1760 = vmor %vm1758, %vm1759
  %v1761 = vsel %vm1760, %v1752, %v1757
  %v1762 = vmul.f32 %v1736, %v1761
  %v1763 = vmul.f32 %v1737, %v1761
  %v1764 = vmul.f32 %v1738, %v1761
  %v1765 = vmul.f32 %v1762, %v1721
  %v1766 = vmul.f32 %v1763, %v1721
  %v1767 = vmul.f32 %v1764, %v1721
  %v1768 = vadd.f32 %v1765, %v1724
  %v1769 = vadd.f32 %v1766, %v1724
  %v1770 = vadd.f32 %v1767, %v1724
  %v1771 = vld [vmem:[%s6 + $0x628] sm:$0xff]
  %v1772 = vld [vmem:[%s6 + $0x630] sm:$0xff]
  %v1773 = vld [vmem:[%s6 + $0x638] sm:$0xff]
  %v1774 = vld [vmem:[%s6 + $0x640] sm:$0xff]
  %v1775 = vld [vmem:[%s6 + $0x648] sm:$0xff]
  %v1776 = vld [vmem:[%s6 + $0x650] sm:$0xff]
  %v1777 = vld [vmem:[%s6 + $0x658] sm:$0xff]
  %v1778 = vld [vmem:[%s6 + $0x660] sm:$0xff]
  %v1779 = vld [vmem:[%s6 + $0x668] sm:$0xff]
  %v1780 = vld [vmem:[%s6 + $0x670] sm:$0xff]
  %v1781 = vld [vmem:[%s6 + $0x678] sm:$0xff]
  %v1782 = vld [vmem:[%s6 + $0x680] sm:$0xff]
  %v1783 = vld [vmem:[%s6 + $0x688] sm:$0xff]
  %v1784 = vld [vmem:[%s6 + $0x690] sm:$0xff]
  %v1785 = vld [vmem:[%s6 + $0x698] sm:$0xff]
  %v1786 = vld [vmem:[%s6 + $0x6a0] sm:$0xff]
  %v1787 = vperm.slane %v30, 2
  %1788 = vmatpush.msra.mxu0 %v1786
  %1789 = vmatpush.msra.mxu0 %v1785
  %1790 = vmatpush.msra.mxu0 %v1784
  %1791 = vmatpush.msra.mxu0 %v1783
  %1792 = vmatpush.msra.mxu0 %v1782
  %1793 = vmatpush.msra.mxu0 %v1781
  %1794 = vmatpush.msra.mxu0 %v1780
  %1795 = vmatpush.msra.mxu0 %v1779
  %1796 = vmatpush.msra.mxu0 %v1778
  %1797 = vmatpush.msra.mxu0 %v1777
  %1798 = vmatpush.msra.mxu0 %v1776
  %1799 = vmatpush.msra.mxu0 %v1775
  %1800 = vmatpush.msra.mxu0 %v1774
  %1801 = vmatpush.msra.mxu0 %v1773
  %1802 = vmatpush.msra.mxu0 %v1772
  %1803 = vmatpush.msra.mxu0 %v1771
  %1804 = vmatmul.f32.gmra.mxu0 %v1725
  %v1805 = vpop.f32.mrf.mxu0
  %v1806 = vadd.f32 %v1787, %v1805
  %1807 = vmatmul.f32.gmra.mxu0 %v1726
  %v1808 = vpop.f32.mrf.mxu0
  %v1809 = vadd.f32 %v1787, %v1808
  %1810 = vdwg.mxu0
  %1811 = vst [vmem:[%s8] sm:$0xff] %v1806
  %1812 = vst [vmem:[%s8 + $0x8] sm:$0xff] %v1809
  %1813 = vst [vmem:[%s8 + $0x10] sm:$0xff] %v1768
  %1814 = vst [vmem:[%s8 + $0x18] sm:$0xff] %v1769
  %1815 = vst [vmem:[%s8 + $0x20] sm:$0xff] %v1770
  // Predicated region
  $region34: #{hetero_gnn_forward.1} parent=0 // pred_check
    _
  $region35: #{hetero_gnn_forward.1} parent=0 // pred_check_branch
    %1817 = sbr.rel (0) target = $region37
  $region36: #{hetero_gnn_forward.1} parent=0 // pred_region
    _
  $region37: #{hetero_gnn_forward.1} parent=0 // pred_fallthru
    _
  // Predicated region
  $region38: #{hetero_gnn_forward.1} parent=0 // pred_check
    _
  $region39: #{hetero_gnn_forward.1} parent=0 // pred_check_branch
    %1819 = sbr.rel (0) target = $region41
  $region40: #{hetero_gnn_forward.1} parent=0 // pred_region
    _
  $region41: #{hetero_gnn_forward.1} parent=0 // pred_fallthru
    _

</llo_original>
